<compile_context>
chip_gen: v5e
topology: v5e:2x2
jax: 0.10.0
libtpu: 0.0.40
codegen_flags: <defaults>
</compile_context>

<pallas_src>
import functools

import jax
import jax.numpy as jnp
import numpy as np
from jax import lax
from jax.experimental import pallas as pl
from jax.experimental.pallas import tpu as pltpu

D_MODEL = 32
NUM_HEADS = 4
LN_EPS = 1e-5

# raw (PyTorch-equivalent) parameters; weights are (in_features, out_features)
PARAM_ORDER = ("wq", "bq", "wk", "bk", "wv", "bv", "wp", "bp",
               "wl", "bl", "g1", "be1", "we", "bex", "ws", "bsq", "g2", "be2")

# packed operands actually fed to the kernel (all rank-2)
PACKED_ORDER = ("wq", "bq", "wkv", "bkv", "wpf", "wl", "bl", "g1", "be1",
                "we", "bex", "ws", "bsq", "g2", "be2")


def _layer_norm(x, gamma, beta):
    mu = jnp.mean(x, axis=-1, keepdims=True)
    var = jnp.mean((x - mu) ** 2, axis=-1, keepdims=True)
    return (x - mu) * lax.rsqrt(var + LN_EPS) * gamma + beta


# --------------------------------------------------------------------------- #
# kernel
# --------------------------------------------------------------------------- #
def _rpe_layer_kernel(x_ref, mem_ref, pos_ref,
                      wq_ref, bq_ref, wkv_ref, bkv_ref, wpf_ref,
                      wl_ref, bl_ref, g1_ref, be1_ref,
                      we_ref, bex_ref, ws_ref, bsq_ref, g2_ref, be2_ref,
                      out_ref, attn_ref):
    """One (batch, N-tile) grid step.  x/pos/out/attn are N-tiles; memory and
    the packed weights stay resident in VMEM across the inner (N) grid axis."""
    f32 = jnp.float32
    tn, c = x_ref.shape[1], x_ref.shape[2]
    m = mem_ref.shape[1]
    h = NUM_HEADS
    dh = c // h
    scale = 1.0 / float(np.sqrt(dh))

    x = x_ref[0]        # (tn, c)      compute dtype (f32 or bf16)
    mem = mem_ref[0]    # (m, c)
    pos = pos_ref[0]    # (tn, m, c)

    # --- projections: q from the x tile; fused k|v from memory (one MXU launch)
    q = jnp.dot(x, wq_ref[...], preferred_element_type=f32) + bq_ref[...].astype(f32)
    kv = jnp.dot(mem, wkv_ref[...], preferred_element_type=f32) + bkv_ref[...].astype(f32)
    k, v = kv[:, :c], kv[:, c:]

    # --- folded positional projection:
    #   r[n, h*c + cc] = sum_d q[n, h*dh + d] * wp[cc, h*dh + d]
    #   scores_p[h, n, m] = sum_cc pos[n, m, cc] * r[n, h*c + cc]   (+ const/m)
    # The bp contribution is constant over m and dropped (softmax shift-invariant).
    r = jnp.dot(q, wpf_ref[...], preferred_element_type=f32)        # (tn, h*c)
    r3 = r.reshape(tn, h, c).astype(pos.dtype)                      # keep pos narrow on the MXU

    # head-major views with heads leading (canonical batched-matmul layout)
    qh = jnp.transpose(q.reshape(tn, h, dh), (1, 0, 2))             # (h, tn, dh)
    kh = jnp.transpose(k.reshape(m, h, dh), (1, 0, 2))              # (h, m, dh)
    vh = jnp.transpose(v.reshape(m, h, dh), (1, 0, 2))              # (h, m, dh)

    # content scores, batched over heads: (h, tn, m)
    scores_e = jnp.einsum('hnd,hmd->hnm', qh, kh, preferred_element_type=f32)
    # positional scores, batched over query rows: (tn, h, m) -> (h, tn, m)
    scores_p = jnp.einsum('nhc,nmc->nhm', r3, pos, preferred_element_type=f32)
    scores = (scores_e + jnp.transpose(scores_p, (1, 0, 2))) * scale

    # --- softmax over the memory axis (f32); EUP approx reciprocal for denom.
    scores = scores - jnp.max(scores, axis=-1, keepdims=True)
    expd = jnp.exp(scores)
    attn = expd * pl.reciprocal(jnp.sum(expd, axis=-1, keepdims=True), approx=True)
    attn_ref[0] = attn.astype(attn_ref.dtype)   # single lane-dense store (last dim = M)

    # --- attn @ V, batched over heads, then back to (tn, c)
    hid = jnp.einsum('hnm,hmd->hnd', attn, vh, preferred_element_type=f32)
    hidden = jnp.transpose(hid, (1, 0, 2)).reshape(tn, c)

    # --- RPEAttentionLayer tail: linear -> +residual -> LayerNorm
    lin = jnp.dot(hidden, wl_ref[...], preferred_element_type=f32) + bl_ref[...].astype(f32)
    y1 = _layer_norm(lin + x.astype(f32), g1_ref[...].astype(f32), be1_ref[...].astype(f32))

    # --- AttentionOutput: expand -> ReLU -> squeeze -> +residual -> LayerNorm
    ff = jnp.dot(y1, we_ref[...], preferred_element_type=f32) + bex_ref[...].astype(f32)
    ff = jnp.maximum(ff, 0.0)
    ff = jnp.dot(ff, ws_ref[...], preferred_element_type=f32) + bsq_ref[...].astype(f32)
    out_ref[0] = _layer_norm(y1 + ff, g2_ref[...].astype(f32),
                             be2_ref[...].astype(f32)).astype(out_ref.dtype)


# --------------------------------------------------------------------------- #
# wrapper
# --------------------------------------------------------------------------- #
def _fold_wp(wp, num_heads):
    """Pack wp (C, C) into a block-diagonal (C, H*C) matrix so that
    (q @ wp_fold)[n, h*C + c] = sum_d q[n, h*dh + d] * wp[c, h*dh + d]."""
    c = wp.shape[0]
    dh = c // num_heads
    a = wp.reshape(c, num_heads, dh)                   # a[cc, h, d] = wp[cc, h*dh+d]
    eye = jnp.eye(num_heads, dtype=wp.dtype)
    f = jnp.einsum('chd,hg->hdgc', a, eye)             # (h, dh, g, c)
    return f.reshape(num_heads * dh, num_heads * c)    # (C, H*C)


def _pack_params(params, dtype):
    # NOTE: params["bp"] is intentionally unused -- it only shifts attention
    # logits by a per-(query, head) constant, which softmax is invariant to.
    packed = {
        "wq": params["wq"], "bq": params["bq"],
        "wkv": jnp.concatenate([params["wk"], params["wv"]], axis=1),
        "bkv": jnp.concatenate([params["bk"], params["bv"]], axis=1),
        "wpf": _fold_wp(params["wp"], NUM_HEADS),
        "wl": params["wl"], "bl": params["bl"],
        "g1": params["g1"], "be1": params["be1"],
        "we": params["we"], "bex": params["bex"],
        "ws": params["ws"], "bsq": params["bsq"],
        "g2": params["g2"], "be2": params["be2"],
    }
    return [packed[name].astype(dtype) for name in PACKED_ORDER]


def _choose_tile_n(n, m, c, h, itemsize, budget_bytes=24 << 20):
    """Largest N-tile (multiple of 8, divisor of N, <=128) whose double-buffered
    pos tile + attention-score tile fit the budget (sized for v7x's 64 MiB)."""
    cands = [t for t in (128, 64, 32, 16, 8) if t <= n and n % t == 0]
    for t in cands:
        per_buf = t * m * c * itemsize + h * t * m * 4
        if 2 * per_buf <= budget_bytes:
            return t
    return cands[-1] if cands else n


def rpe_transformer_layer(x, mem, pos, params, *, compute_dtype=jnp.float32,
                          tile_n=None, interpret=False):
    """Forward pass. Returns (output_states (B,N,C) f32, attention (B,H,N,M) f32)."""
    B, N, C = x.shape
    M = mem.shape[1]
    H = NUM_HEADS
    assert C % H == 0 and mem.shape[2] == C and pos.shape == (B, N, M, C)

    cd = jnp.dtype(compute_dtype)
    itemsize = cd.itemsize
    if tile_n is None:
        tile_n = _choose_tile_n(N, M, C, H, itemsize)
    assert N % tile_n == 0
    nt = N // tile_n

    weights = _pack_params(params, cd)
    x_c, mem_c, pos_c = x.astype(cd), mem.astype(cd), pos.astype(cd)

    in_specs = [
        pl.BlockSpec((1, tile_n, C), lambda b, i: (b, i, 0)),        # x tile
        pl.BlockSpec((1, M, C), lambda b, i: (b, 0, 0)),             # mem (resident over i)
        pl.BlockSpec((1, tile_n, M, C), lambda b, i: (b, i, 0, 0)),  # pos tile
    ] + [pl.BlockSpec(w.shape, lambda b, i: (0, 0)) for w in weights]  # all rank-2

    out_specs = (
        pl.BlockSpec((1, tile_n, C), lambda b, i: (b, i, 0)),
        pl.BlockSpec((1, H, tile_n, M), lambda b, i: (b, 0, i, 0)),
    )
    out_shape = (jax.ShapeDtypeStruct((B, N, C), jnp.float32),
                 jax.ShapeDtypeStruct((B, H, N, M), jnp.float32))

    # explicit scoped-VMEM sizing: double-buffered operands + f32 in-kernel temps
    tile_bytes = (tile_n * M * C * itemsize              # pos tile
                  + 2 * tile_n * C * itemsize            # x tile
                  + M * C * itemsize                     # mem
                  + H * tile_n * M * 4                   # attn out tile
                  + tile_n * C * 4                       # out tile
                  + sum(int(w.size) * itemsize for w in weights))
    temps = 10 * H * tile_n * M * 4 + 4 * M * C * 4
    vmem_limit = int(min(64 << 20, max(32 << 20, 2 * tile_bytes + temps + (8 << 20))))

    out, attn = pl.pallas_call(
        _rpe_layer_kernel,
        grid=(B, nt),
        in_specs=in_specs,
        out_specs=out_specs,
        out_shape=out_shape,
        compiler_params=pltpu.CompilerParams(
            dimension_semantics=("parallel", "parallel"),
            vmem_limit_bytes=vmem_limit),
        interpret=interpret,
    )(x_c, mem_c, pos_c, *weights)
    return out, attn


# --------------------------------------------------------------------------- #
# params / pure-JAX reference
# --------------------------------------------------------------------------- #
def init_params(key, d_model=D_MODEL):
    d_ffn = 2 * d_model
    dims = {
        "wq": (d_model, d_model), "bq": (1, d_model),
        "wk": (d_model, d_model), "bk": (1, d_model),
        "wv": (d_model, d_model), "bv": (1, d_model),
        "wp": (d_model, d_model), "bp": (1, d_model),
        "wl": (d_model, d_model), "bl": (1, d_model),
        "g1": (1, d_model), "be1": (1, d_model),
        "we": (d_model, d_ffn), "bex": (1, d_ffn),
        "ws": (d_ffn, d_model), "bsq": (1, d_model),
        "g2": (1, d_model), "be2": (1, d_model),
    }
    keys = jax.random.split(key, len(PARAM_ORDER))
    params = {}
    for k_rng, name in zip(keys, PARAM_ORDER):
        shape = dims[name]
        if name in ("g1", "g2"):
            params[name] = (jnp.ones(shape, jnp.float32)
                            + 0.05 * jax.random.normal(k_rng, shape, jnp.float32))
        elif name.startswith("b"):
            params[name] = 0.1 * jax.random.normal(k_rng, shape, jnp.float32)
        else:
            params[name] = (jax.random.normal(k_rng, shape, jnp.float32)
                            / np.sqrt(shape[0]))
    return params


def reference(x, mem, pos, params):
    """Pure-JAX reference mirroring the PyTorch forward (uses bp explicitly)."""
    B, N, C = x.shape
    M = mem.shape[1]
    H, dh = NUM_HEADS, C // NUM_HEADS

    q = x @ params["wq"] + params["bq"]
    k = mem @ params["wk"] + params["bk"]
    v = mem @ params["wv"] + params["bv"]
    p = pos @ params["wp"] + params["bp"]

    qh = q.reshape(B, N, H, dh).transpose(0, 2, 1, 3)
    kh = k.reshape(B, M, H, dh).transpose(0, 2, 1, 3)
    vh = v.reshape(B, M, H, dh).transpose(0, 2, 1, 3)
    ph = p.reshape(B, N, M, H, dh).transpose(0, 3, 1, 2, 4)

    scores_e = jnp.einsum('bhnc,bhmc->bhnm', qh, kh)
    scores_p = jnp.einsum('bhnc,bhnmc->bhnm', qh, ph)
    scores = (scores_e + scores_p) / np.sqrt(dh)
    attn = jax.nn.softmax(scores, axis=-1)

    hid = jnp.einsum('bhnm,bhmc->bhnc', attn, vh)
    hid = hid.transpose(0, 2, 1, 3).reshape(B, N, C)

    lin = hid @ params["wl"] + params["bl"]
    y1 = _layer_norm(lin + x, params["g1"], params["be1"])

    ff = jnp.maximum(y1 @ params["we"] + params["bex"], 0.0)
    ff = ff @ params["ws"] + params["bsq"]
    out = _layer_norm(y1 + ff, params["g2"], params["be2"])
    return out, attn


if __name__ == "__main__":
    key = jax.random.PRNGKey(0)
    B, N, M = 2, 16, 16
    k1, k2, k3, kp = jax.random.split(key, 4)
    x = jax.random.normal(k1, (B, N, D_MODEL), jnp.float32)
    mem = jax.random.normal(k2, (B, M, D_MODEL), jnp.float32)
    pos = jax.random.normal(k3, (B, N, M, D_MODEL), jnp.float32)
    params = init_params(kp)

    ref_out, ref_attn = reference(x, mem, pos, params)

    # f32 path, explicitly tiled over N (grid = (B, N // 8)) -- tight check.
    # Tolerance covers the EUP approx reciprocal in the softmax and the dropped
    # (softmax-invariant) positional bias.
    f32_fn = jax.jit(functools.partial(rpe_transformer_layer,
                                       compute_dtype=jnp.float32, tile_n=8))
    out, attn = jax.block_until_ready(f32_fn(x, mem, pos, params))
    np.testing.assert_allclose(np.asarray(out), np.asarray(ref_out),
                               rtol=5e-3, atol=5e-3)
    np.testing.assert_allclose(np.asarray(attn), np.asarray(ref_attn),
                               rtol=5e-3, atol=5e-3)

    # bf16 MXU path (halves pos HBM traffic; 2x MXU rate on v6e/v7x), auto tile.
    # Loose sanity check against the f32 reference (bf16 inputs + weights).
    bf16_fn = jax.jit(functools.partial(rpe_transformer_layer,
                                        compute_dtype=jnp.bfloat16))
    out16, attn16 = jax.block_until_ready(bf16_fn(x, mem, pos, params))
    np.testing.assert_allclose(np.asarray(out16), np.asarray(ref_out),
                               rtol=1e-1, atol=1e-1)
    np.testing.assert_allclose(np.asarray(attn16), np.asarray(ref_attn),
                               rtol=1e-1, atol=1e-1)

    print("KERNEL_OK")
</pallas_src>

<mosaic_0001>
module attributes {stable_mosaic.version = 11 : i64} {
  func.func @_rpe_layer_kernel(%arg0: i32, %arg1: i32, %arg2: memref<1x8x32xf32, #tpu.memory_space<vmem>>, %arg3: memref<1x16x32xf32, #tpu.memory_space<vmem>>, %arg4: memref<1x8x16x32xf32, #tpu.memory_space<vmem>>, %arg5: memref<32x32xf32, #tpu.memory_space<vmem>>, %arg6: memref<1x32xf32, #tpu.memory_space<vmem>>, %arg7: memref<32x64xf32, #tpu.memory_space<vmem>>, %arg8: memref<1x64xf32, #tpu.memory_space<vmem>>, %arg9: memref<32x128xf32, #tpu.memory_space<vmem>>, %arg10: memref<32x32xf32, #tpu.memory_space<vmem>>, %arg11: memref<1x32xf32, #tpu.memory_space<vmem>>, %arg12: memref<1x32xf32, #tpu.memory_space<vmem>>, %arg13: memref<1x32xf32, #tpu.memory_space<vmem>>, %arg14: memref<32x64xf32, #tpu.memory_space<vmem>>, %arg15: memref<1x64xf32, #tpu.memory_space<vmem>>, %arg16: memref<64x32xf32, #tpu.memory_space<vmem>>, %arg17: memref<1x32xf32, #tpu.memory_space<vmem>>, %arg18: memref<1x32xf32, #tpu.memory_space<vmem>>, %arg19: memref<1x32xf32, #tpu.memory_space<vmem>>, %arg20: memref<1x8x32xf32, #tpu.memory_space<vmem>>, %arg21: memref<1x4x8x16xf32, #tpu.memory_space<vmem>>) attributes {dimension_semantics = [#tpu.dimension_semantics<parallel>, #tpu.dimension_semantics<parallel>], iteration_bounds = array<i64: 2, 2>, scalar_prefetch = 0 : i64, scratch_operands = 0 : i64, tpu.core_type = #tpu.core_type<tc>, window_params = [{transform_indices = @transform_0, window_bounds = array<i64: 1, 8, 32>}, {transform_indices = @transform_1, window_bounds = array<i64: 1, 16, 32>}, {transform_indices = @transform_2, window_bounds = array<i64: 1, 8, 16, 32>}, {pipeline_mode = #tpu.pipeline_mode<synchronous>, transform_indices = @transform_3, window_bounds = array<i64: 32, 32>}, {pipeline_mode = #tpu.pipeline_mode<synchronous>, transform_indices = @transform_4, window_bounds = array<i64: 1, 32>}, {pipeline_mode = #tpu.pipeline_mode<synchronous>, transform_indices = @transform_5, window_bounds = array<i64: 32, 64>}, {pipeline_mode = #tpu.pipeline_mode<synchronous>, transform_indices = @transform_6, window_bounds = array<i64: 1, 64>}, {pipeline_mode = #tpu.pipeline_mode<synchronous>, transform_indices = @transform_7, window_bounds = array<i64: 32, 128>}, {pipeline_mode = #tpu.pipeline_mode<synchronous>, transform_indices = @transform_8, window_bounds = array<i64: 32, 32>}, {pipeline_mode = #tpu.pipeline_mode<synchronous>, transform_indices = @transform_9, window_bounds = array<i64: 1, 32>}, {pipeline_mode = #tpu.pipeline_mode<synchronous>, transform_indices = @transform_10, window_bounds = array<i64: 1, 32>}, {pipeline_mode = #tpu.pipeline_mode<synchronous>, transform_indices = @transform_11, window_bounds = array<i64: 1, 32>}, {pipeline_mode = #tpu.pipeline_mode<synchronous>, transform_indices = @transform_12, window_bounds = array<i64: 32, 64>}, {pipeline_mode = #tpu.pipeline_mode<synchronous>, transform_indices = @transform_13, window_bounds = array<i64: 1, 64>}, {pipeline_mode = #tpu.pipeline_mode<synchronous>, transform_indices = @transform_14, window_bounds = array<i64: 64, 32>}, {pipeline_mode = #tpu.pipeline_mode<synchronous>, transform_indices = @transform_15, window_bounds = array<i64: 1, 32>}, {pipeline_mode = #tpu.pipeline_mode<synchronous>, transform_indices = @transform_16, window_bounds = array<i64: 1, 32>}, {pipeline_mode = #tpu.pipeline_mode<synchronous>, transform_indices = @transform_17, window_bounds = array<i64: 1, 32>}, {transform_indices = @transform_18, window_bounds = array<i64: 1, 8, 32>}, {transform_indices = @transform_19, window_bounds = array<i64: 1, 4, 8, 16>}]} {
    %c0 = arith.constant 0 : index
    %c0_0 = arith.constant 0 : index
    %c0_1 = arith.constant 0 : index
    %0 = vector.load %arg2[%c0, %c0_0, %c0_1] : memref<1x8x32xf32, #tpu.memory_space<vmem>>, vector<1x8x32xf32>
    %1 = vector.shape_cast %0 : vector<1x8x32xf32> to vector<8x32xf32>
    %c0_2 = arith.constant 0 : index
    %c0_3 = arith.constant 0 : index
    %c0_4 = arith.constant 0 : index
    %2 = vector.load %arg3[%c0_2, %c0_3, %c0_4] : memref<1x16x32xf32, #tpu.memory_space<vmem>>, vector<1x16x32xf32>
    %3 = vector.shape_cast %2 : vector<1x16x32xf32> to vector<16x32xf32>
    %c0_5 = arith.constant 0 : index
    %c0_6 = arith.constant 0 : index
    %c0_7 = arith.constant 0 : index
    %c0_8 = arith.constant 0 : index
    %4 = vector.load %arg4[%c0_5, %c0_6, %c0_7, %c0_8] : memref<1x8x16x32xf32, #tpu.memory_space<vmem>>, vector<1x8x16x32xf32>
    %5 = vector.shape_cast %4 : vector<1x8x16x32xf32> to vector<8x16x32xf32>
    %c0_9 = arith.constant 0 : index
    %c0_10 = arith.constant 0 : index
    %6 = vector.load %arg5[%c0_9, %c0_10] : memref<32x32xf32, #tpu.memory_space<vmem>>, vector<32x32xf32>
    %cst = arith.constant dense<0.000000e+00> : vector<8x32xf32>
    %7 = tpu.matmul %1, %6, %cst {dimension_numbers = #tpu.dot_dimension_numbers<[1], [0], [0], [1], [0, 0, 1, 1], [], []>} : vector<8x32xf32>, vector<32x32xf32>, vector<8x32xf32> -> vector<8x32xf32>
    %c0_11 = arith.constant 0 : index
    %c0_12 = arith.constant 0 : index
    %8 = vector.load %arg6[%c0_11, %c0_12] : memref<1x32xf32, #tpu.memory_space<vmem>>, vector<1x32xf32>
    %9 = vector.broadcast %8 : vector<1x32xf32> to vector<8x32xf32>
    %10 = arith.addf %7, %9 : vector<8x32xf32>
    %c0_13 = arith.constant 0 : index
    %c0_14 = arith.constant 0 : index
    %11 = vector.load %arg7[%c0_13, %c0_14] : memref<32x64xf32, #tpu.memory_space<vmem>>, vector<32x64xf32>
    %cst_15 = arith.constant dense<0.000000e+00> : vector<16x64xf32>
    %12 = tpu.matmul %3, %11, %cst_15 {dimension_numbers = #tpu.dot_dimension_numbers<[1], [0], [0], [1], [0, 0, 1, 1], [], []>} : vector<16x32xf32>, vector<32x64xf32>, vector<16x64xf32> -> vector<16x64xf32>
    %c0_16 = arith.constant 0 : index
    %c0_17 = arith.constant 0 : index
    %13 = vector.load %arg8[%c0_16, %c0_17] : memref<1x64xf32, #tpu.memory_space<vmem>>, vector<1x64xf32>
    %14 = vector.broadcast %13 : vector<1x64xf32> to vector<16x64xf32>
    %15 = arith.addf %12, %14 : vector<16x64xf32>
    %16 = vector.extract_strided_slice %15 {offsets = [0, 0], sizes = [16, 32], strides = [1, 1]} : vector<16x64xf32> to vector<16x32xf32>
    %17 = vector.extract_strided_slice %15 {offsets = [0, 32], sizes = [16, 32], strides = [1, 1]} : vector<16x64xf32> to vector<16x32xf32>
    %c0_18 = arith.constant 0 : index
    %c0_19 = arith.constant 0 : index
    %18 = vector.load %arg9[%c0_18, %c0_19] : memref<32x128xf32, #tpu.memory_space<vmem>>, vector<32x128xf32>
    %cst_20 = arith.constant dense<0.000000e+00> : vector<8x128xf32>
    %19 = tpu.matmul %10, %18, %cst_20 {dimension_numbers = #tpu.dot_dimension_numbers<[1], [0], [0], [1], [0, 0, 1, 1], [], []>} : vector<8x32xf32>, vector<32x128xf32>, vector<8x128xf32> -> vector<8x128xf32>
    %20 = vector.shape_cast %19 : vector<8x128xf32> to vector<8x4x32xf32>
    %21 = vector.shape_cast %10 : vector<8x32xf32> to vector<8x4x8xf32>
    %22 = tpu.transpose %21, [1, 0, 2] : vector<8x4x8xf32> -> vector<4x8x8xf32>
    %23 = vector.shape_cast %16 : vector<16x32xf32> to vector<16x4x8xf32>
    %24 = tpu.transpose %23, [1, 0, 2] : vector<16x4x8xf32> -> vector<4x16x8xf32>
    %25 = vector.shape_cast %17 : vector<16x32xf32> to vector<16x4x8xf32>
    %26 = tpu.transpose %25, [1, 0, 2] : vector<16x4x8xf32> -> vector<4x16x8xf32>
    "tpu.trace_start"() <{level = 10 : i32, message = "hnd,hmd->hnm"}> : () -> ()
    %cst_21 = arith.constant dense<0.000000e+00> : vector<4x8x16xf32>
    %27 = tpu.matmul %22, %24, %cst_21 {dimension_numbers = #tpu.dot_dimension_numbers<[2], [2], [1], [1], [0, 0, 0, 1, 1, 1], [0], [0]>} : vector<4x8x8xf32>, vector<4x16x8xf32>, vector<4x8x16xf32> -> vector<4x8x16xf32>
    "tpu.trace_stop"() : () -> ()
    "tpu.trace_start"() <{level = 10 : i32, message = "nhc,nmc->nhm"}> : () -> ()
    %cst_22 = arith.constant dense<0.000000e+00> : vector<8x4x16xf32>
    %28 = tpu.matmul %20, %5, %cst_22 {dimension_numbers = #tpu.dot_dimension_numbers<[2], [2], [1], [1], [0, 0, 0, 1, 1, 1], [0], [0]>} : vector<8x4x32xf32>, vector<8x16x32xf32>, vector<8x4x16xf32> -> vector<8x4x16xf32>
    "tpu.trace_stop"() : () -> ()
    %29 = tpu.transpose %28, [1, 0, 2] : vector<8x4x16xf32> -> vector<4x8x16xf32>
    %30 = arith.addf %27, %29 : vector<4x8x16xf32>
    %cst_23 = arith.constant 0.353553385 : f32
    %31 = vector.broadcast %cst_23 : f32 to vector<4x8x16xf32>
    %32 = arith.mulf %30, %31 : vector<4x8x16xf32>
    %cst_24 = arith.constant dense<0xFF800000> : vector<4x8xf32>
    %33 = vector.multi_reduction <maximumf>, %32, %cst_24 [2] : vector<4x8x16xf32> to vector<4x8xf32>
    %34 = vector.shape_cast %33 : vector<4x8xf32> to vector<4x8x1xf32>
    %35 = vector.broadcast %34 : vector<4x8x1xf32> to vector<4x8x16xf32>
    %36 = arith.subf %32, %35 : vector<4x8x16xf32>
    %37 = math.exp %36 : vector<4x8x16xf32>
    %cst_25 = arith.constant dense<0.000000e+00> : vector<4x8xf32>
    %38 = vector.multi_reduction <add>, %37, %cst_25 [2] : vector<4x8x16xf32> to vector<4x8xf32>
    %39 = vector.shape_cast %38 : vector<4x8xf32> to vector<4x8x1xf32>
    %40 = tpu.reciprocal %39 {approx = true} : vector<4x8x1xf32> -> vector<4x8x1xf32>
    %41 = vector.broadcast %40 : vector<4x8x1xf32> to vector<4x8x16xf32>
    %42 = arith.mulf %37, %41 : vector<4x8x16xf32>
    %c0_26 = arith.constant 0 : index
    %c0_27 = arith.constant 0 : index
    %c0_28 = arith.constant 0 : index
    %c0_29 = arith.constant 0 : index
    %43 = vector.load %arg21[%c0_26, %c0_27, %c0_28, %c0_29] : memref<1x4x8x16xf32, #tpu.memory_space<vmem>>, vector<1x4x8x16xf32>
    %44 = vector.shape_cast %43 : vector<1x4x8x16xf32> to vector<4x8x16xf32>
    %45 = vector.shape_cast %42 : vector<4x8x16xf32> to vector<1x4x8x16xf32>
    tpu.vector_store %arg21[%c0_26, %c0_27, %c0_28, %c0_29], %45 {strides = array<i32>} : memref<1x4x8x16xf32, #tpu.memory_space<vmem>>, vector<1x4x8x16xf32>,
    "tpu.trace_start"() <{level = 10 : i32, message = "hnm,hmd->hnd"}> : () -> ()
    %cst_30 = arith.constant dense<0.000000e+00> : vector<4x8x8xf32>
    %46 = tpu.matmul %42, %26, %cst_30 {dimension_numbers = #tpu.dot_dimension_numbers<[2], [1], [1], [2], [0, 0, 0, 1, 1, 2], [0], [0]>} : vector<4x8x16xf32>, vector<4x16x8xf32>, vector<4x8x8xf32> -> vector<4x8x8xf32>
    "tpu.trace_stop"() : () -> ()
    %47 = tpu.transpose %46, [1, 0, 2] : vector<4x8x8xf32> -> vector<8x4x8xf32>
    %48 = vector.shape_cast %47 : vector<8x4x8xf32> to vector<8x32xf32>
    %c0_31 = arith.constant 0 : index
    %c0_32 = arith.constant 0 : index
    %49 = vector.load %arg10[%c0_31, %c0_32] : memref<32x32xf32, #tpu.memory_space<vmem>>, vector<32x32xf32>
    %cst_33 = arith.constant dense<0.000000e+00> : vector<8x32xf32>
    %50 = tpu.matmul %48, %49, %cst_33 {dimension_numbers = #tpu.dot_dimension_numbers<[1], [0], [0], [1], [0, 0, 1, 1], [], []>} : vector<8x32xf32>, vector<32x32xf32>, vector<8x32xf32> -> vector<8x32xf32>
    %c0_34 = arith.constant 0 : index
    %c0_35 = arith.constant 0 : index
    %51 = vector.load %arg11[%c0_34, %c0_35] : memref<1x32xf32, #tpu.memory_space<vmem>>, vector<1x32xf32>
    %52 = vector.broadcast %51 : vector<1x32xf32> to vector<8x32xf32>
    %53 = arith.addf %50, %52 : vector<8x32xf32>
    %54 = arith.addf %53, %1 : vector<8x32xf32>
    %c0_36 = arith.constant 0 : index
    %c0_37 = arith.constant 0 : index
    %55 = vector.load %arg12[%c0_36, %c0_37] : memref<1x32xf32, #tpu.memory_space<vmem>>, vector<1x32xf32>
    %c0_38 = arith.constant 0 : index
    %c0_39 = arith.constant 0 : index
    %56 = vector.load %arg13[%c0_38, %c0_39] : memref<1x32xf32, #tpu.memory_space<vmem>>, vector<1x32xf32>
    %cst_40 = arith.constant dense<0.000000e+00> : vector<8xf32>
    %57 = vector.multi_reduction <add>, %54, %cst_40 [1] : vector<8x32xf32> to vector<8xf32>
    %58 = vector.shape_cast %57 : vector<8xf32> to vector<8x1xf32>
    %cst_41 = arith.constant 3.200000e+01 : f32
    %59 = vector.broadcast %cst_41 : f32 to vector<8x1xf32>
    %60 = arith.divf %58, %59 : vector<8x1xf32>
    %61 = vector.broadcast %60 : vector<8x1xf32> to vector<8x32xf32>
    %62 = arith.subf %54, %61 : vector<8x32xf32>
    %63 = arith.mulf %62, %62 : vector<8x32xf32>
    %cst_42 = arith.constant dense<0.000000e+00> : vector<8xf32>
    %64 = vector.multi_reduction <add>, %63, %cst_42 [1] : vector<8x32xf32> to vector<8xf32>
    %65 = vector.shape_cast %64 : vector<8xf32> to vector<8x1xf32>
    %cst_43 = arith.constant 3.200000e+01 : f32
    %66 = vector.broadcast %cst_43 : f32 to vector<8x1xf32>
    %67 = arith.divf %65, %66 : vector<8x1xf32>
    %68 = vector.broadcast %60 : vector<8x1xf32> to vector<8x32xf32>
    %69 = arith.subf %54, %68 : vector<8x32xf32>
    %cst_44 = arith.constant 9.99999974E-6 : f32
    %70 = vector.broadcast %cst_44 : f32 to vector<8x1xf32>
    %71 = arith.addf %67, %70 : vector<8x1xf32>
    %72 = math.rsqrt %71 : vector<8x1xf32>
    %73 = vector.broadcast %72 : vector<8x1xf32> to vector<8x32xf32>
    %74 = arith.mulf %69, %73 : vector<8x32xf32>
    %75 = vector.broadcast %55 : vector<1x32xf32> to vector<8x32xf32>
    %76 = arith.mulf %74, %75 : vector<8x32xf32>
    %77 = vector.broadcast %56 : vector<1x32xf32> to vector<8x32xf32>
    %78 = arith.addf %76, %77 : vector<8x32xf32>
    %c0_45 = arith.constant 0 : index
    %c0_46 = arith.constant 0 : index
    %79 = vector.load %arg14[%c0_45, %c0_46] : memref<32x64xf32, #tpu.memory_space<vmem>>, vector<32x64xf32>
    %cst_47 = arith.constant dense<0.000000e+00> : vector<8x64xf32>
    %80 = tpu.matmul %78, %79, %cst_47 {dimension_numbers = #tpu.dot_dimension_numbers<[1], [0], [0], [1], [0, 0, 1, 1], [], []>} : vector<8x32xf32>, vector<32x64xf32>, vector<8x64xf32> -> vector<8x64xf32>
    %c0_48 = arith.constant 0 : index
    %c0_49 = arith.constant 0 : index
    %81 = vector.load %arg15[%c0_48, %c0_49] : memref<1x64xf32, #tpu.memory_space<vmem>>, vector<1x64xf32>
    %82 = vector.broadcast %81 : vector<1x64xf32> to vector<8x64xf32>
    %83 = arith.addf %80, %82 : vector<8x64xf32>
    %cst_50 = arith.constant 0.000000e+00 : f32
    %84 = vector.broadcast %cst_50 : f32 to vector<8x64xf32>
    %85 = arith.maximumf %83, %84 : vector<8x64xf32>
    %c0_51 = arith.constant 0 : index
    %c0_52 = arith.constant 0 : index
    %86 = vector.load %arg16[%c0_51, %c0_52] : memref<64x32xf32, #tpu.memory_space<vmem>>, vector<64x32xf32>
    %cst_53 = arith.constant dense<0.000000e+00> : vector<8x32xf32>
    %87 = tpu.matmul %85, %86, %cst_53 {dimension_numbers = #tpu.dot_dimension_numbers<[1], [0], [0], [1], [0, 0, 1, 1], [], []>} : vector<8x64xf32>, vector<64x32xf32>, vector<8x32xf32> -> vector<8x32xf32>
    %c0_54 = arith.constant 0 : index
    %c0_55 = arith.constant 0 : index
    %88 = vector.load %arg17[%c0_54, %c0_55] : memref<1x32xf32, #tpu.memory_space<vmem>>, vector<1x32xf32>
    %89 = vector.broadcast %88 : vector<1x32xf32> to vector<8x32xf32>
    %90 = arith.addf %87, %89 : vector<8x32xf32>
    %91 = arith.addf %78, %90 : vector<8x32xf32>
    %c0_56 = arith.constant 0 : index
    %c0_57 = arith.constant 0 : index
    %92 = vector.load %arg18[%c0_56, %c0_57] : memref<1x32xf32, #tpu.memory_space<vmem>>, vector<1x32xf32>
    %c0_58 = arith.constant 0 : index
    %c0_59 = arith.constant 0 : index
    %93 = vector.load %arg19[%c0_58, %c0_59] : memref<1x32xf32, #tpu.memory_space<vmem>>, vector<1x32xf32>
    %cst_60 = arith.constant dense<0.000000e+00> : vector<8xf32>
    %94 = vector.multi_reduction <add>, %91, %cst_60 [1] : vector<8x32xf32> to vector<8xf32>
    %95 = vector.shape_cast %94 : vector<8xf32> to vector<8x1xf32>
    %cst_61 = arith.constant 3.200000e+01 : f32
    %96 = vector.broadcast %cst_61 : f32 to vector<8x1xf32>
    %97 = arith.divf %95, %96 : vector<8x1xf32>
    %98 = vector.broadcast %97 : vector<8x1xf32> to vector<8x32xf32>
    %99 = arith.subf %91, %98 : vector<8x32xf32>
    %100 = arith.mulf %99, %99 : vector<8x32xf32>
    %cst_62 = arith.constant dense<0.000000e+00> : vector<8xf32>
    %101 = vector.multi_reduction <add>, %100, %cst_62 [1] : vector<8x32xf32> to vector<8xf32>
    %102 = vector.shape_cast %101 : vector<8xf32> to vector<8x1xf32>
    %cst_63 = arith.constant 3.200000e+01 : f32
    %103 = vector.broadcast %cst_63 : f32 to vector<8x1xf32>
    %104 = arith.divf %102, %103 : vector<8x1xf32>
    %105 = vector.broadcast %97 : vector<8x1xf32> to vector<8x32xf32>
    %106 = arith.subf %91, %105 : vector<8x32xf32>
    %cst_64 = arith.constant 9.99999974E-6 : f32
    %107 = vector.broadcast %cst_64 : f32 to vector<8x1xf32>
    %108 = arith.addf %104, %107 : vector<8x1xf32>
    %109 = math.rsqrt %108 : vector<8x1xf32>
    %110 = vector.broadcast %109 : vector<8x1xf32> to vector<8x32xf32>
    %111 = arith.mulf %106, %110 : vector<8x32xf32>
    %112 = vector.broadcast %92 : vector<1x32xf32> to vector<8x32xf32>
    %113 = arith.mulf %111, %112 : vector<8x32xf32>
    %114 = vector.broadcast %93 : vector<1x32xf32> to vector<8x32xf32>
    %115 = arith.addf %113, %114 : vector<8x32xf32>
    %c0_65 = arith.constant 0 : index
    %c0_66 = arith.constant 0 : index
    %c0_67 = arith.constant 0 : index
    %116 = vector.load %arg20[%c0_65, %c0_66, %c0_67] : memref<1x8x32xf32, #tpu.memory_space<vmem>>, vector<1x8x32xf32>
    %117 = vector.shape_cast %116 : vector<1x8x32xf32> to vector<8x32xf32>
    %118 = vector.shape_cast %115 : vector<8x32xf32> to vector<1x8x32xf32>
    tpu.vector_store %arg20[%c0_65, %c0_66, %c0_67], %118 {strides = array<i32>} : memref<1x8x32xf32, #tpu.memory_space<vmem>>, vector<1x8x32xf32>,
    return
  }
  func.func @transform_0(%arg0: i32, %arg1: i32) -> (i32, i32, i32) {
    %c0_i32 = arith.constant 0 : i32
    %c0_i32_0 = arith.constant 0 : i32
    return %arg0, %arg1, %c0_i32 : i32, i32, i32
  }
  func.func @transform_1(%arg0: i32, %arg1: i32) -> (i32, i32, i32) {
    %c0_i32 = arith.constant 0 : i32
    %c0_i32_0 = arith.constant 0 : i32
    %c0_i32_1 = arith.constant 0 : i32
    return %arg0, %c0_i32, %c0_i32_0 : i32, i32, i32
  }
  func.func @transform_2(%arg0: i32, %arg1: i32) -> (i32, i32, i32, i32) {
    %c0_i32 = arith.constant 0 : i32
    %c0_i32_0 = arith.constant 0 : i32
    %c0_i32_1 = arith.constant 0 : i32
    return %arg0, %arg1, %c0_i32, %c0_i32_0 : i32, i32, i32, i32
  }
  func.func @transform_3(%arg0: i32, %arg1: i32) -> (i32, i32) {
    %c0_i32 = arith.constant 0 : i32
    %c0_i32_0 = arith.constant 0 : i32
    %c0_i32_1 = arith.constant 0 : i32
    return %c0_i32, %c0_i32_0 : i32, i32
  }
  func.func @transform_4(%arg0: i32, %arg1: i32) -> (i32, i32) {
    %c0_i32 = arith.constant 0 : i32
    %c0_i32_0 = arith.constant 0 : i32
    %c0_i32_1 = arith.constant 0 : i32
    return %c0_i32, %c0_i32_0 : i32, i32
  }
  func.func @transform_5(%arg0: i32, %arg1: i32) -> (i32, i32) {
    %c0_i32 = arith.constant 0 : i32
    %c0_i32_0 = arith.constant 0 : i32
    %c0_i32_1 = arith.constant 0 : i32
    return %c0_i32, %c0_i32_0 : i32, i32
  }
  func.func @transform_6(%arg0: i32, %arg1: i32) -> (i32, i32) {
    %c0_i32 = arith.constant 0 : i32
    %c0_i32_0 = arith.constant 0 : i32
    %c0_i32_1 = arith.constant 0 : i32
    return %c0_i32, %c0_i32_0 : i32, i32
  }
  func.func @transform_7(%arg0: i32, %arg1: i32) -> (i32, i32) {
    %c0_i32 = arith.constant 0 : i32
    %c0_i32_0 = arith.constant 0 : i32
    %c0_i32_1 = arith.constant 0 : i32
    return %c0_i32, %c0_i32_0 : i32, i32
  }
  func.func @transform_8(%arg0: i32, %arg1: i32) -> (i32, i32) {
    %c0_i32 = arith.constant 0 : i32
    %c0_i32_0 = arith.constant 0 : i32
    %c0_i32_1 = arith.constant 0 : i32
    return %c0_i32, %c0_i32_0 : i32, i32
  }
  func.func @transform_9(%arg0: i32, %arg1: i32) -> (i32, i32) {
    %c0_i32 = arith.constant 0 : i32
    %c0_i32_0 = arith.constant 0 : i32
    %c0_i32_1 = arith.constant 0 : i32
    return %c0_i32, %c0_i32_0 : i32, i32
  }
  func.func @transform_10(%arg0: i32, %arg1: i32) -> (i32, i32) {
    %c0_i32 = arith.constant 0 : i32
    %c0_i32_0 = arith.constant 0 : i32
    %c0_i32_1 = arith.constant 0 : i32
    return %c0_i32, %c0_i32_0 : i32, i32
  }
  func.func @transform_11(%arg0: i32, %arg1: i32) -> (i32, i32) {
    %c0_i32 = arith.constant 0 : i32
    %c0_i32_0 = arith.constant 0 : i32
    %c0_i32_1 = arith.constant 0 : i32
    return %c0_i32, %c0_i32_0 : i32, i32
  }
  func.func @transform_12(%arg0: i32, %arg1: i32) -> (i32, i32) {
    %c0_i32 = arith.constant 0 : i32
    %c0_i32_0 = arith.constant 0 : i32
    %c0_i32_1 = arith.constant 0 : i32
    return %c0_i32, %c0_i32_0 : i32, i32
  }
  func.func @transform_13(%arg0: i32, %arg1: i32) -> (i32, i32) {
    %c0_i32 = arith.constant 0 : i32
    %c0_i32_0 = arith.constant 0 : i32
    %c0_i32_1 = arith.constant 0 : i32
    return %c0_i32, %c0_i32_0 : i32, i32
  }
  func.func @transform_14(%arg0: i32, %arg1: i32) -> (i32, i32) {
    %c0_i32 = arith.constant 0 : i32
    %c0_i32_0 = arith.constant 0 : i32
    %c0_i32_1 = arith.constant 0 : i32
    return %c0_i32, %c0_i32_0 : i32, i32
  }
  func.func @transform_15(%arg0: i32, %arg1: i32) -> (i32, i32) {
    %c0_i32 = arith.constant 0 : i32
    %c0_i32_0 = arith.constant 0 : i32
    %c0_i32_1 = arith.constant 0 : i32
    return %c0_i32, %c0_i32_0 : i32, i32
  }
  func.func @transform_16(%arg0: i32, %arg1: i32) -> (i32, i32) {
    %c0_i32 = arith.constant 0 : i32
    %c0_i32_0 = arith.constant 0 : i32
    %c0_i32_1 = arith.constant 0 : i32
    return %c0_i32, %c0_i32_0 : i32, i32
  }
  func.func @transform_17(%arg0: i32, %arg1: i32) -> (i32, i32) {
    %c0_i32 = arith.constant 0 : i32
    %c0_i32_0 = arith.constant 0 : i32
    %c0_i32_1 = arith.constant 0 : i32
    return %c0_i32, %c0_i32_0 : i32, i32
  }
  func.func @transform_18(%arg0: i32, %arg1: i32) -> (i32, i32, i32) {
    %c0_i32 = arith.constant 0 : i32
    %c0_i32_0 = arith.constant 0 : i32
    return %arg0, %arg1, %c0_i32 : i32, i32, i32
  }
  func.func @transform_19(%arg0: i32, %arg1: i32) -> (i32, i32, i32, i32) {
    %c0_i32 = arith.constant 0 : i32
    %c0_i32_0 = arith.constant 0 : i32
    %c0_i32_1 = arith.constant 0 : i32
    return %arg0, %c0_i32, %arg1, %c0_i32_0 : i32, i32, i32, i32
  }
}

</mosaic_0001>

<llo_original>
// kernel: rpe_transformer_layer.1
$region0: #{rpe_transformer_layer.1}
  #allocation0 [shape = 'u32[]', space=smem, size = 0x4, offset = 0x4, fixed_abs, tag = 'smem constant byte address 0x4 - core index']
  #allocation1 [shape = 'u32[72,128]{1,0:T(1,128)}', space=vmem, size = 0x9000, scoped, tag = 'internal scratch']
  %s0 = inlined_call_operand.vmem [shape: f32[2,16,32], index: 0, kind: input, shape index: {}]
  %s1 = inlined_call_operand.vmem [shape: f32[2,16,32], index: 1, kind: input, shape index: {}]
  %s2 = inlined_call_operand.hbm [shape: f32[2,16,16,32], index: 2, kind: input, shape index: {}]
  %s3 = inlined_call_operand.vmem [shape: f32[32,32], index: 3, kind: input, shape index: {}]
  %s4 = inlined_call_operand.vmem [shape: f32[1,32], index: 4, kind: input, shape index: {}]
  %s5 = inlined_call_operand.vmem [shape: f32[32,64], index: 5, kind: input, shape index: {}]
  %s6 = inlined_call_operand.vmem [shape: f32[1,64], index: 6, kind: input, shape index: {}]
  %s7 = inlined_call_operand.vmem [shape: f32[32,128], index: 7, kind: input, shape index: {}]
  %s8 = inlined_call_operand.vmem [shape: f32[32,32], index: 8, kind: input, shape index: {}]
  %s9 = inlined_call_operand.vmem [shape: f32[1,32], index: 9, kind: input, shape index: {}]
  %s10 = inlined_call_operand.vmem [shape: f32[1,32], index: 10, kind: input, shape index: {}]
  %s11 = inlined_call_operand.vmem [shape: f32[1,32], index: 11, kind: input, shape index: {}]
  %s12 = inlined_call_operand.vmem [shape: f32[32,64], index: 12, kind: input, shape index: {}]
  %s13 = inlined_call_operand.vmem [shape: f32[1,64], index: 13, kind: input, shape index: {}]
  %s14 = inlined_call_operand.vmem [shape: f32[64,32], index: 14, kind: input, shape index: {}]
  %s15 = inlined_call_operand.vmem [shape: f32[1,32], index: 15, kind: input, shape index: {}]
  %s16 = inlined_call_operand.vmem [shape: f32[1,32], index: 16, kind: input, shape index: {}]
  %s17 = inlined_call_operand.vmem [shape: f32[1,32], index: 17, kind: input, shape index: {}]
  %s18 = inlined_call_operand.hbm [shape: f32[2,16,32], index: 18, kind: output, shape index: {0}]
  %s19 = inlined_call_operand.hbm [shape: f32[2,4,16,16], index: 19, kind: output, shape index: {1}]
  %20 = xla_tuple %s18, %s19
  %s21 = sld [smem:[#allocation0]]
  $region117: #{rpe_transformer_layer.1} parent=0
    _
  %s23 = ssub.s32 1, %s21
  %s24 = scalar_select 0, %s23, %s21
  $region1: #{rpe_transformer_layer.1} parent=0
    #allocation2 [shape = 'u8[131072]{0}', space=vmem, size = 0x20000, scoped, tag = 'input window, operand 2']
    #allocation3 [shape = 's32[2]{0}', space=sflag, size = 0x8, scoped, tag = 'scoped memory for rpe_transformer_layer.1']
    #allocation4 [shape = 's32[2]{0}', space=sflag, size = 0x8, scoped, tag = 'scoped memory for rpe_transformer_layer.1']
    #allocation5 [shape = 'u8[8192]{0}', space=vmem, size = 0x2000, scoped, tag = 'output window, operand 0']
    #allocation6 [shape = 'u8[32768]{0}', space=vmem, size = 0x8000, scoped, tag = 'output window, operand 1']
    #allocation7 [shape = 's32[2]{0}', space=sflag, size = 0x8, scoped, tag = 'scoped memory for rpe_transformer_layer.1']
    %25 = vsyncpa [#allocation3], 0
    %s26 = scalar_lea.sflag [#allocation3], 1
    %27 = vsyncpa %s26, 0
    %28 = vsyncpa [#allocation4], 0
    %s29 = scalar_lea.sflag [#allocation4], 1
    %30 = vsyncpa %s29, 0
    %31 = vsyncpa [#allocation7], 0
    %s32 = scalar_lea.sflag [#allocation7], 1
    %33 = vsyncpa %s32, 0
    loop: start=0, step=1, limit=6
    $region2: #{rpe_transformer_layer.1} parent=1 // loop_pre_header
      _
    $region3: #{rpe_transformer_layer.1} parent=1 // loop_header
      %s35 = sphi 0, %s39
      %p36 = scmp.ge.s32.totalorder %s35, 6
      %s42 = sphi 0, %s54
      %s43 = sphi 0, %s50
      %s44 = sphi 0, %s42
      %s45 = sphi 0, %s43
      %s46 = sphi 0, %s44
      %s47 = sphi 0, %s45
      %s59 = sphi 0, %s61
      %s62 = sphi 0, %s59
      %s63 = sphi 0, %s62
      %s79 = sphi 0, %s63
      %s85 = sphi 0, %s87
      %s88 = sphi 0, %s85
      %s89 = sphi 0, %s88
      %s105 = sphi 0, %s89
      %s113 = sphi 0, %s115
      %s116 = sphi 0, %s113
      %s117 = sphi 0, %s116
      %s133 = sphi 0, %s117
      %s137 = sphi 0, %s137
      %s139 = sphi 0, %s137
      %s140 = sphi 0, %s139
      %s154 = sphi 0, %s140
      %s158 = sphi 0, %s158
      %s160 = sphi 0, %s158
      %s161 = sphi 0, %s160
      %s175 = sphi 0, %s161
      %s179 = sphi 0, %s179
      %s181 = sphi 0, %s179
      %s182 = sphi 0, %s181
      %s196 = sphi 0, %s182
      %s200 = sphi 0, %s200
      %s202 = sphi 0, %s200
      %s203 = sphi 0, %s202
      %s217 = sphi 0, %s203
      %s221 = sphi 0, %s221
      %s223 = sphi 0, %s221
      %s224 = sphi 0, %s223
      %s238 = sphi 0, %s224
      %s242 = sphi 0, %s242
      %s244 = sphi 0, %s242
      %s245 = sphi 0, %s244
      %s259 = sphi 0, %s245
      %s263 = sphi 0, %s263
      %s265 = sphi 0, %s263
      %s266 = sphi 0, %s265
      %s280 = sphi 0, %s266
      %s284 = sphi 0, %s284
      %s286 = sphi 0, %s284
      %s287 = sphi 0, %s286
      %s301 = sphi 0, %s287
      %s305 = sphi 0, %s305
      %s307 = sphi 0, %s305
      %s308 = sphi 0, %s307
      %s322 = sphi 0, %s308
      %s326 = sphi 0, %s326
      %s328 = sphi 0, %s326
      %s329 = sphi 0, %s328
      %s343 = sphi 0, %s329
      %s347 = sphi 0, %s347
      %s349 = sphi 0, %s347
      %s350 = sphi 0, %s349
      %s364 = sphi 0, %s350
      %s368 = sphi 0, %s368
      %s370 = sphi 0, %s368
      %s371 = sphi 0, %s370
      %s385 = sphi 0, %s371
      %s389 = sphi 0, %s389
      %s391 = sphi 0, %s389
      %s392 = sphi 0, %s391
      %s406 = sphi 0, %s392
      %s410 = sphi 0, %s410
      %s412 = sphi 0, %s410
      %s413 = sphi 0, %s412
      %s427 = sphi 0, %s413
      %s431 = sphi 0, %s431
      %s433 = sphi 0, %s431
      %s434 = sphi 0, %s433
      %s448 = sphi 0, %s434
      %s456 = sphi 0, %s458
      %s459 = sphi 0, %s456
      %s460 = sphi 0, %s459
      %s476 = sphi 0, %s460
      %s484 = sphi 0, %s486
      %s487 = sphi 0, %s484
      %s488 = sphi 0, %s487
      %s504 = sphi 0, %s488
    $region4: #{rpe_transformer_layer.1} parent=1 // loop_header_branch
      %38 = sbr.rel (%p36) target = $region8
    $region5: #{rpe_transformer_layer.1} parent=1 // loop_body
      %s40 = ssub.s32 %s35, 1
      %s41 = ssub.s32 %s35, 2
      %s48 = sadd.s32 1, %s43
      %p49 = scmp.ge.s32.totalorder %s48, 2
      %s50 = scalar_select %p49, 0, %s48
      %s51 = sadd.s32 1, %s42
      %s52 = scalar_select %p49, %s51, %s42
      %p53 = scmp.ge.s32.totalorder %s52, 2
      %s54 = scalar_select %p53, 0, %s52
      %s55 = ssub.s32 %s42, %s54
      %s56 = ssub.s32 %s43, %s50
      %s57 = sor.u32 %s55, %s56
      %p58 = scmp.eq.s32.totalorder %s57, 0
      %s60 = sadd.s32 %s59, 1
      %s61 = scalar_select %p58, %s59, %s60
      %p64 = pneg %p58
      %p65 = scmp.eq.s32.totalorder %s35, 3
      %p66 = por %p64, %p65
      %p67 = scmp.ne.s32.totalorder %s59, %s62
      %p68 = scmp.eq.s32.totalorder %s35, 0
      %p69 = por %p67, %p68
      %p70 = scmp.ne.s32.totalorder %s59, %s62
      %p71 = scmp.eq.s32.totalorder %s40, 3
      %p72 = por %p70, %p71
      %p73 = scmp.ne.s32.totalorder %s62, %s63
      %p74 = scmp.eq.s32.totalorder %s40, 0
      %p75 = por %p73, %p74
      %p76 = scmp.ne.s32.totalorder %s62, %s63
      %p77 = scmp.eq.s32.totalorder %s41, 3
      %p78 = por %p76, %p77
      %p80 = scmp.ne.s32.totalorder %s63, %s79
      %p81 = scmp.eq.s32.totalorder %s41, 0
      %p82 = por %p80, %p81
      %s83 = ssub.s32 %s42, %s54
      %p84 = scmp.eq.s32.totalorder %s83, 0
      %s86 = sadd.s32 %s85, 1
      %s87 = scalar_select %p84, %s85, %s86
      %p90 = pneg %p84
      %p91 = scmp.eq.s32.totalorder %s35, 3
      %p92 = por %p90, %p91
      %p93 = scmp.ne.s32.totalorder %s85, %s88
      %p94 = scmp.eq.s32.totalorder %s35, 0
      %p95 = por %p93, %p94
      %p96 = scmp.ne.s32.totalorder %s85, %s88
      %p97 = scmp.eq.s32.totalorder %s40, 3
      %p98 = por %p96, %p97
      %p99 = scmp.ne.s32.totalorder %s88, %s89
      %p100 = scmp.eq.s32.totalorder %s40, 0
      %p101 = por %p99, %p100
      %p102 = scmp.ne.s32.totalorder %s88, %s89
      %p103 = scmp.eq.s32.totalorder %s41, 3
      %p104 = por %p102, %p103
      %p106 = scmp.ne.s32.totalorder %s89, %s105
      %p107 = scmp.eq.s32.totalorder %s41, 0
      %p108 = por %p106, %p107
      %s109 = ssub.s32 %s42, %s54
      %s110 = ssub.s32 %s43, %s50
      %s111 = sor.u32 %s109, %s110
      %p112 = scmp.eq.s32.totalorder %s111, 0
      %s114 = sadd.s32 %s113, 1
      %s115 = scalar_select %p112, %s113, %s114
      %p118 = pneg %p112
      %p119 = scmp.eq.s32.totalorder %s35, 3
      %p120 = por %p118, %p119
      %p121 = scmp.ne.s32.totalorder %s113, %s116
      %p122 = scmp.eq.s32.totalorder %s35, 0
      %p123 = por %p121, %p122
      %p124 = scmp.ne.s32.totalorder %s113, %s116
      %p125 = scmp.eq.s32.totalorder %s40, 3
      %p126 = por %p124, %p125
      %p127 = scmp.ne.s32.totalorder %s116, %s117
      %p128 = scmp.eq.s32.totalorder %s40, 0
      %p129 = por %p127, %p128
      %p130 = scmp.ne.s32.totalorder %s116, %s117
      %p131 = scmp.eq.s32.totalorder %s41, 3
      %p132 = por %p130, %p131
      %p134 = scmp.ne.s32.totalorder %s117, %s133
      %p135 = scmp.eq.s32.totalorder %s41, 0
      %p136 = por %p134, %p135
      %s138 = sadd.s32 %s137, 1
      %p141 = scmp.eq.s32.totalorder %s35, 3
      %p142 = scmp.ne.s32.totalorder %s137, %s139
      %p143 = scmp.eq.s32.totalorder %s35, 0
      %p144 = por %p142, %p143
      %p145 = scmp.ne.s32.totalorder %s137, %s139
      %p146 = scmp.eq.s32.totalorder %s40, 3
      %p147 = por %p145, %p146
      %p148 = scmp.ne.s32.totalorder %s139, %s140
      %p149 = scmp.eq.s32.totalorder %s40, 0
      %p150 = por %p148, %p149
      %p151 = scmp.ne.s32.totalorder %s139, %s140
      %p152 = scmp.eq.s32.totalorder %s41, 3
      %p153 = por %p151, %p152
      %p155 = scmp.ne.s32.totalorder %s140, %s154
      %p156 = scmp.eq.s32.totalorder %s41, 0
      %p157 = por %p155, %p156
      %s159 = sadd.s32 %s158, 1
      %p162 = scmp.eq.s32.totalorder %s35, 3
      %p163 = scmp.ne.s32.totalorder %s158, %s160
      %p164 = scmp.eq.s32.totalorder %s35, 0
      %p165 = por %p163, %p164
      %p166 = scmp.ne.s32.totalorder %s158, %s160
      %p167 = scmp.eq.s32.totalorder %s40, 3
      %p168 = por %p166, %p167
      %p169 = scmp.ne.s32.totalorder %s160, %s161
      %p170 = scmp.eq.s32.totalorder %s40, 0
      %p171 = por %p169, %p170
      %p172 = scmp.ne.s32.totalorder %s160, %s161
      %p173 = scmp.eq.s32.totalorder %s41, 3
      %p174 = por %p172, %p173
      %p176 = scmp.ne.s32.totalorder %s161, %s175
      %p177 = scmp.eq.s32.totalorder %s41, 0
      %p178 = por %p176, %p177
      %s180 = sadd.s32 %s179, 1
      %p183 = scmp.eq.s32.totalorder %s35, 3
      %p184 = scmp.ne.s32.totalorder %s179, %s181
      %p185 = scmp.eq.s32.totalorder %s35, 0
      %p186 = por %p184, %p185
      %p187 = scmp.ne.s32.totalorder %s179, %s181
      %p188 = scmp.eq.s32.totalorder %s40, 3
      %p189 = por %p187, %p188
      %p190 = scmp.ne.s32.totalorder %s181, %s182
      %p191 = scmp.eq.s32.totalorder %s40, 0
      %p192 = por %p190, %p191
      %p193 = scmp.ne.s32.totalorder %s181, %s182
      %p194 = scmp.eq.s32.totalorder %s41, 3
      %p195 = por %p193, %p194
      %p197 = scmp.ne.s32.totalorder %s182, %s196
      %p198 = scmp.eq.s32.totalorder %s41, 0
      %p199 = por %p197, %p198
      %s201 = sadd.s32 %s200, 1
      %p204 = scmp.eq.s32.totalorder %s35, 3
      %p205 = scmp.ne.s32.totalorder %s200, %s202
      %p206 = scmp.eq.s32.totalorder %s35, 0
      %p207 = por %p205, %p206
      %p208 = scmp.ne.s32.totalorder %s200, %s202
      %p209 = scmp.eq.s32.totalorder %s40, 3
      %p210 = por %p208, %p209
      %p211 = scmp.ne.s32.totalorder %s202, %s203
      %p212 = scmp.eq.s32.totalorder %s40, 0
      %p213 = por %p211, %p212
      %p214 = scmp.ne.s32.totalorder %s202, %s203
      %p215 = scmp.eq.s32.totalorder %s41, 3
      %p216 = por %p214, %p215
      %p218 = scmp.ne.s32.totalorder %s203, %s217
      %p219 = scmp.eq.s32.totalorder %s41, 0
      %p220 = por %p218, %p219
      %s222 = sadd.s32 %s221, 1
      %p225 = scmp.eq.s32.totalorder %s35, 3
      %p226 = scmp.ne.s32.totalorder %s221, %s223
      %p227 = scmp.eq.s32.totalorder %s35, 0
      %p228 = por %p226, %p227
      %p229 = scmp.ne.s32.totalorder %s221, %s223
      %p230 = scmp.eq.s32.totalorder %s40, 3
      %p231 = por %p229, %p230
      %p232 = scmp.ne.s32.totalorder %s223, %s224
      %p233 = scmp.eq.s32.totalorder %s40, 0
      %p234 = por %p232, %p233
      %p235 = scmp.ne.s32.totalorder %s223, %s224
      %p236 = scmp.eq.s32.totalorder %s41, 3
      %p237 = por %p235, %p236
      %p239 = scmp.ne.s32.totalorder %s224, %s238
      %p240 = scmp.eq.s32.totalorder %s41, 0
      %p241 = por %p239, %p240
      %s243 = sadd.s32 %s242, 1
      %p246 = scmp.eq.s32.totalorder %s35, 3
      %p247 = scmp.ne.s32.totalorder %s242, %s244
      %p248 = scmp.eq.s32.totalorder %s35, 0
      %p249 = por %p247, %p248
      %p250 = scmp.ne.s32.totalorder %s242, %s244
      %p251 = scmp.eq.s32.totalorder %s40, 3
      %p252 = por %p250, %p251
      %p253 = scmp.ne.s32.totalorder %s244, %s245
      %p254 = scmp.eq.s32.totalorder %s40, 0
      %p255 = por %p253, %p254
      %p256 = scmp.ne.s32.totalorder %s244, %s245
      %p257 = scmp.eq.s32.totalorder %s41, 3
      %p258 = por %p256, %p257
      %p260 = scmp.ne.s32.totalorder %s245, %s259
      %p261 = scmp.eq.s32.totalorder %s41, 0
      %p262 = por %p260, %p261
      %s264 = sadd.s32 %s263, 1
      %p267 = scmp.eq.s32.totalorder %s35, 3
      %p268 = scmp.ne.s32.totalorder %s263, %s265
      %p269 = scmp.eq.s32.totalorder %s35, 0
      %p270 = por %p268, %p269
      %p271 = scmp.ne.s32.totalorder %s263, %s265
      %p272 = scmp.eq.s32.totalorder %s40, 3
      %p273 = por %p271, %p272
      %p274 = scmp.ne.s32.totalorder %s265, %s266
      %p275 = scmp.eq.s32.totalorder %s40, 0
      %p276 = por %p274, %p275
      %p277 = scmp.ne.s32.totalorder %s265, %s266
      %p278 = scmp.eq.s32.totalorder %s41, 3
      %p279 = por %p277, %p278
      %p281 = scmp.ne.s32.totalorder %s266, %s280
      %p282 = scmp.eq.s32.totalorder %s41, 0
      %p283 = por %p281, %p282
      %s285 = sadd.s32 %s284, 1
      %p288 = scmp.eq.s32.totalorder %s35, 3
      %p289 = scmp.ne.s32.totalorder %s284, %s286
      %p290 = scmp.eq.s32.totalorder %s35, 0
      %p291 = por %p289, %p290
      %p292 = scmp.ne.s32.totalorder %s284, %s286
      %p293 = scmp.eq.s32.totalorder %s40, 3
      %p294 = por %p292, %p293
      %p295 = scmp.ne.s32.totalorder %s286, %s287
      %p296 = scmp.eq.s32.totalorder %s40, 0
      %p297 = por %p295, %p296
      %p298 = scmp.ne.s32.totalorder %s286, %s287
      %p299 = scmp.eq.s32.totalorder %s41, 3
      %p300 = por %p298, %p299
      %p302 = scmp.ne.s32.totalorder %s287, %s301
      %p303 = scmp.eq.s32.totalorder %s41, 0
      %p304 = por %p302, %p303
      %s306 = sadd.s32 %s305, 1
      %p309 = scmp.eq.s32.totalorder %s35, 3
      %p310 = scmp.ne.s32.totalorder %s305, %s307
      %p311 = scmp.eq.s32.totalorder %s35, 0
      %p312 = por %p310, %p311
      %p313 = scmp.ne.s32.totalorder %s305, %s307
      %p314 = scmp.eq.s32.totalorder %s40, 3
      %p315 = por %p313, %p314
      %p316 = scmp.ne.s32.totalorder %s307, %s308
      %p317 = scmp.eq.s32.totalorder %s40, 0
      %p318 = por %p316, %p317
      %p319 = scmp.ne.s32.totalorder %s307, %s308
      %p320 = scmp.eq.s32.totalorder %s41, 3
      %p321 = por %p319, %p320
      %p323 = scmp.ne.s32.totalorder %s308, %s322
      %p324 = scmp.eq.s32.totalorder %s41, 0
      %p325 = por %p323, %p324
      %s327 = sadd.s32 %s326, 1
      %p330 = scmp.eq.s32.totalorder %s35, 3
      %p331 = scmp.ne.s32.totalorder %s326, %s328
      %p332 = scmp.eq.s32.totalorder %s35, 0
      %p333 = por %p331, %p332
      %p334 = scmp.ne.s32.totalorder %s326, %s328
      %p335 = scmp.eq.s32.totalorder %s40, 3
      %p336 = por %p334, %p335
      %p337 = scmp.ne.s32.totalorder %s328, %s329
      %p338 = scmp.eq.s32.totalorder %s40, 0
      %p339 = por %p337, %p338
      %p340 = scmp.ne.s32.totalorder %s328, %s329
      %p341 = scmp.eq.s32.totalorder %s41, 3
      %p342 = por %p340, %p341
      %p344 = scmp.ne.s32.totalorder %s329, %s343
      %p345 = scmp.eq.s32.totalorder %s41, 0
      %p346 = por %p344, %p345
      %s348 = sadd.s32 %s347, 1
      %p351 = scmp.eq.s32.totalorder %s35, 3
      %p352 = scmp.ne.s32.totalorder %s347, %s349
      %p353 = scmp.eq.s32.totalorder %s35, 0
      %p354 = por %p352, %p353
      %p355 = scmp.ne.s32.totalorder %s347, %s349
      %p356 = scmp.eq.s32.totalorder %s40, 3
      %p357 = por %p355, %p356
      %p358 = scmp.ne.s32.totalorder %s349, %s350
      %p359 = scmp.eq.s32.totalorder %s40, 0
      %p360 = por %p358, %p359
      %p361 = scmp.ne.s32.totalorder %s349, %s350
      %p362 = scmp.eq.s32.totalorder %s41, 3
      %p363 = por %p361, %p362
      %p365 = scmp.ne.s32.totalorder %s350, %s364
      %p366 = scmp.eq.s32.totalorder %s41, 0
      %p367 = por %p365, %p366
      %s369 = sadd.s32 %s368, 1
      %p372 = scmp.eq.s32.totalorder %s35, 3
      %p373 = scmp.ne.s32.totalorder %s368, %s370
      %p374 = scmp.eq.s32.totalorder %s35, 0
      %p375 = por %p373, %p374
      %p376 = scmp.ne.s32.totalorder %s368, %s370
      %p377 = scmp.eq.s32.totalorder %s40, 3
      %p378 = por %p376, %p377
      %p379 = scmp.ne.s32.totalorder %s370, %s371
      %p380 = scmp.eq.s32.totalorder %s40, 0
      %p381 = por %p379, %p380
      %p382 = scmp.ne.s32.totalorder %s370, %s371
      %p383 = scmp.eq.s32.totalorder %s41, 3
      %p384 = por %p382, %p383
      %p386 = scmp.ne.s32.totalorder %s371, %s385
      %p387 = scmp.eq.s32.totalorder %s41, 0
      %p388 = por %p386, %p387
      %s390 = sadd.s32 %s389, 1
      %p393 = scmp.eq.s32.totalorder %s35, 3
      %p394 = scmp.ne.s32.totalorder %s389, %s391
      %p395 = scmp.eq.s32.totalorder %s35, 0
      %p396 = por %p394, %p395
      %p397 = scmp.ne.s32.totalorder %s389, %s391
      %p398 = scmp.eq.s32.totalorder %s40, 3
      %p399 = por %p397, %p398
      %p400 = scmp.ne.s32.totalorder %s391, %s392
      %p401 = scmp.eq.s32.totalorder %s40, 0
      %p402 = por %p400, %p401
      %p403 = scmp.ne.s32.totalorder %s391, %s392
      %p404 = scmp.eq.s32.totalorder %s41, 3
      %p405 = por %p403, %p404
      %p407 = scmp.ne.s32.totalorder %s392, %s406
      %p408 = scmp.eq.s32.totalorder %s41, 0
      %p409 = por %p407, %p408
      %s411 = sadd.s32 %s410, 1
      %p414 = scmp.eq.s32.totalorder %s35, 3
      %p415 = scmp.ne.s32.totalorder %s410, %s412
      %p416 = scmp.eq.s32.totalorder %s35, 0
      %p417 = por %p415, %p416
      %p418 = scmp.ne.s32.totalorder %s410, %s412
      %p419 = scmp.eq.s32.totalorder %s40, 3
      %p420 = por %p418, %p419
      %p421 = scmp.ne.s32.totalorder %s412, %s413
      %p422 = scmp.eq.s32.totalorder %s40, 0
      %p423 = por %p421, %p422
      %p424 = scmp.ne.s32.totalorder %s412, %s413
      %p425 = scmp.eq.s32.totalorder %s41, 3
      %p426 = por %p424, %p425
      %p428 = scmp.ne.s32.totalorder %s413, %s427
      %p429 = scmp.eq.s32.totalorder %s41, 0
      %p430 = por %p428, %p429
      %s432 = sadd.s32 %s431, 1
      %p435 = scmp.eq.s32.totalorder %s35, 3
      %p436 = scmp.ne.s32.totalorder %s431, %s433
      %p437 = scmp.eq.s32.totalorder %s35, 0
      %p438 = por %p436, %p437
      %p439 = scmp.ne.s32.totalorder %s431, %s433
      %p440 = scmp.eq.s32.totalorder %s40, 3
      %p441 = por %p439, %p440
      %p442 = scmp.ne.s32.totalorder %s433, %s434
      %p443 = scmp.eq.s32.totalorder %s40, 0
      %p444 = por %p442, %p443
      %p445 = scmp.ne.s32.totalorder %s433, %s434
      %p446 = scmp.eq.s32.totalorder %s41, 3
      %p447 = por %p445, %p446
      %p449 = scmp.ne.s32.totalorder %s434, %s448
      %p450 = scmp.eq.s32.totalorder %s41, 0
      %p451 = por %p449, %p450
      %s452 = ssub.s32 %s42, %s54
      %s453 = ssub.s32 %s43, %s50
      %s454 = sor.u32 %s452, %s453
      %p455 = scmp.eq.s32.totalorder %s454, 0
      %s457 = sadd.s32 %s456, 1
      %s458 = scalar_select %p455, %s456, %s457
      %p461 = pneg %p455
      %p462 = scmp.eq.s32.totalorder %s35, 3
      %p463 = por %p461, %p462
      %p464 = scmp.ne.s32.totalorder %s456, %s459
      %p465 = scmp.eq.s32.totalorder %s35, 0
      %p466 = por %p464, %p465
      %p467 = scmp.ne.s32.totalorder %s456, %s459
      %p468 = scmp.eq.s32.totalorder %s40, 3
      %p469 = por %p467, %p468
      %p470 = scmp.ne.s32.totalorder %s459, %s460
      %p471 = scmp.eq.s32.totalorder %s40, 0
      %p472 = por %p470, %p471
      %p473 = scmp.ne.s32.totalorder %s459, %s460
      %p474 = scmp.eq.s32.totalorder %s41, 3
      %p475 = por %p473, %p474
      %p477 = scmp.ne.s32.totalorder %s460, %s476
      %p478 = scmp.eq.s32.totalorder %s41, 0
      %p479 = por %p477, %p478
      %s480 = ssub.s32 %s42, %s54
      %s481 = ssub.s32 %s43, %s50
      %s482 = sor.u32 %s480, %s481
      %p483 = scmp.eq.s32.totalorder %s482, 0
      %s485 = sadd.s32 %s484, 1
      %s486 = scalar_select %p483, %s484, %s485
      %p489 = pneg %p483
      %p490 = scmp.eq.s32.totalorder %s35, 3
      %p491 = por %p489, %p490
      %p492 = scmp.ne.s32.totalorder %s484, %s487
      %p493 = scmp.eq.s32.totalorder %s35, 0
      %p494 = por %p492, %p493
      %p495 = scmp.ne.s32.totalorder %s484, %s487
      %p496 = scmp.eq.s32.totalorder %s40, 3
      %p497 = por %p495, %p496
      %p498 = scmp.ne.s32.totalorder %s487, %s488
      %p499 = scmp.eq.s32.totalorder %s40, 0
      %p500 = por %p498, %p499
      %p501 = scmp.ne.s32.totalorder %s487, %s488
      %p502 = scmp.eq.s32.totalorder %s41, 3
      %p503 = por %p501, %p502
      %p505 = scmp.ne.s32.totalorder %s488, %s504
      %p506 = scmp.eq.s32.totalorder %s41, 0
      %p507 = por %p505, %p506
      %p508 = scmp.le.s32.totalorder 1, %s35
      %p509 = scmp.lt.s32.totalorder %s35, 5
      %p510 = pnand %p508, %p509
      %p511 = pneg %p510
      // Predicated region
      $region9: #{rpe_transformer_layer.1} parent=5 // pred_check
        _
      $region10: #{rpe_transformer_layer.1} parent=5 // pred_check_branch
        %513 = sbr.rel (%p510) target = $region12
      $region11: #{rpe_transformer_layer.1} parent=5 // pred_region
        %s514 = ssub.s32 %s35, 1
        // Predicated region
        $region13: #{rpe_transformer_layer.1} parent=11 // pred_check
          %p515 = pneg %p150
        $region14: #{rpe_transformer_layer.1} parent=11 // pred_check_branch
          %517 = sbr.rel (%p515) target = $region16
        $region15: #{rpe_transformer_layer.1} parent=11 // pred_region
          _
        $region16: #{rpe_transformer_layer.1} parent=11 // pred_fallthru
          _
        // Predicated region
        $region17: #{rpe_transformer_layer.1} parent=11 // pred_check
          %p518 = pneg %p171
        $region18: #{rpe_transformer_layer.1} parent=11 // pred_check_branch
          %520 = sbr.rel (%p518) target = $region20
        $region19: #{rpe_transformer_layer.1} parent=11 // pred_region
          _
        $region20: #{rpe_transformer_layer.1} parent=11 // pred_fallthru
          _
        // Predicated region
        $region21: #{rpe_transformer_layer.1} parent=11 // pred_check
          %p521 = pneg %p192
        $region22: #{rpe_transformer_layer.1} parent=11 // pred_check_branch
          %523 = sbr.rel (%p521) target = $region24
        $region23: #{rpe_transformer_layer.1} parent=11 // pred_region
          _
        $region24: #{rpe_transformer_layer.1} parent=11 // pred_fallthru
          _
        // Predicated region
        $region25: #{rpe_transformer_layer.1} parent=11 // pred_check
          %p524 = pneg %p213
        $region26: #{rpe_transformer_layer.1} parent=11 // pred_check_branch
          %526 = sbr.rel (%p524) target = $region28
        $region27: #{rpe_transformer_layer.1} parent=11 // pred_region
          _
        $region28: #{rpe_transformer_layer.1} parent=11 // pred_fallthru
          _
        // Predicated region
        $region29: #{rpe_transformer_layer.1} parent=11 // pred_check
          %p527 = pneg %p234
        $region30: #{rpe_transformer_layer.1} parent=11 // pred_check_branch
          %529 = sbr.rel (%p527) target = $region32
        $region31: #{rpe_transformer_layer.1} parent=11 // pred_region
          _
        $region32: #{rpe_transformer_layer.1} parent=11 // pred_fallthru
          _
        // Predicated region
        $region33: #{rpe_transformer_layer.1} parent=11 // pred_check
          %p530 = pneg %p255
        $region34: #{rpe_transformer_layer.1} parent=11 // pred_check_branch
          %532 = sbr.rel (%p530) target = $region36
        $region35: #{rpe_transformer_layer.1} parent=11 // pred_region
          _
        $region36: #{rpe_transformer_layer.1} parent=11 // pred_fallthru
          _
        // Predicated region
        $region37: #{rpe_transformer_layer.1} parent=11 // pred_check
          %p533 = pneg %p276
        $region38: #{rpe_transformer_layer.1} parent=11 // pred_check_branch
          %535 = sbr.rel (%p533) target = $region40
        $region39: #{rpe_transformer_layer.1} parent=11 // pred_region
          _
        $region40: #{rpe_transformer_layer.1} parent=11 // pred_fallthru
          _
        // Predicated region
        $region41: #{rpe_transformer_layer.1} parent=11 // pred_check
          %p536 = pneg %p297
        $region42: #{rpe_transformer_layer.1} parent=11 // pred_check_branch
          %538 = sbr.rel (%p536) target = $region44
        $region43: #{rpe_transformer_layer.1} parent=11 // pred_region
          _
        $region44: #{rpe_transformer_layer.1} parent=11 // pred_fallthru
          _
        // Predicated region
        $region45: #{rpe_transformer_layer.1} parent=11 // pred_check
          %p539 = pneg %p318
        $region46: #{rpe_transformer_layer.1} parent=11 // pred_check_branch
          %541 = sbr.rel (%p539) target = $region48
        $region47: #{rpe_transformer_layer.1} parent=11 // pred_region
          _
        $region48: #{rpe_transformer_layer.1} parent=11 // pred_fallthru
          _
        // Predicated region
        $region49: #{rpe_transformer_layer.1} parent=11 // pred_check
          %p542 = pneg %p339
        $region50: #{rpe_transformer_layer.1} parent=11 // pred_check_branch
          %544 = sbr.rel (%p542) target = $region52
        $region51: #{rpe_transformer_layer.1} parent=11 // pred_region
          _
        $region52: #{rpe_transformer_layer.1} parent=11 // pred_fallthru
          _
        // Predicated region
        $region53: #{rpe_transformer_layer.1} parent=11 // pred_check
          %p545 = pneg %p360
        $region54: #{rpe_transformer_layer.1} parent=11 // pred_check_branch
          %547 = sbr.rel (%p545) target = $region56
        $region55: #{rpe_transformer_layer.1} parent=11 // pred_region
          _
        $region56: #{rpe_transformer_layer.1} parent=11 // pred_fallthru
          _
        // Predicated region
        $region57: #{rpe_transformer_layer.1} parent=11 // pred_check
          %p548 = pneg %p381
        $region58: #{rpe_transformer_layer.1} parent=11 // pred_check_branch
          %550 = sbr.rel (%p548) target = $region60
        $region59: #{rpe_transformer_layer.1} parent=11 // pred_region
          _
        $region60: #{rpe_transformer_layer.1} parent=11 // pred_fallthru
          _
        // Predicated region
        $region61: #{rpe_transformer_layer.1} parent=11 // pred_check
          %p551 = pneg %p402
        $region62: #{rpe_transformer_layer.1} parent=11 // pred_check_branch
          %553 = sbr.rel (%p551) target = $region64
        $region63: #{rpe_transformer_layer.1} parent=11 // pred_region
          _
        $region64: #{rpe_transformer_layer.1} parent=11 // pred_fallthru
          _
        // Predicated region
        $region65: #{rpe_transformer_layer.1} parent=11 // pred_check
          %p554 = pneg %p423
        $region66: #{rpe_transformer_layer.1} parent=11 // pred_check_branch
          %556 = sbr.rel (%p554) target = $region68
        $region67: #{rpe_transformer_layer.1} parent=11 // pred_region
          _
        $region68: #{rpe_transformer_layer.1} parent=11 // pred_fallthru
          _
        // Predicated region
        $region69: #{rpe_transformer_layer.1} parent=11 // pred_check
          %p557 = pneg %p444
        $region70: #{rpe_transformer_layer.1} parent=11 // pred_check_branch
          %559 = sbr.rel (%p557) target = $region72
        $region71: #{rpe_transformer_layer.1} parent=11 // pred_region
          _
        $region72: #{rpe_transformer_layer.1} parent=11 // pred_fallthru
          _
      $region12: #{rpe_transformer_layer.1} parent=5 // pred_fallthru
        _
      %p560 = scmp.lt.s32.totalorder %s35, 4
      // Predicated region
      $region73: #{rpe_transformer_layer.1} parent=5 // pred_check
        %p561 = pneg %p560
      $region74: #{rpe_transformer_layer.1} parent=5 // pred_check_branch
        %563 = sbr.rel (%p561) target = $region76
      $region75: #{rpe_transformer_layer.1} parent=5 // pred_region
        // Predicated region
        $region77: #{rpe_transformer_layer.1} parent=75 // pred_check
          %p564 = pneg %p69
        $region78: #{rpe_transformer_layer.1} parent=75 // pred_check_branch
          %566 = sbr.rel (%p564) target = $region80
        $region79: #{rpe_transformer_layer.1} parent=75 // pred_region
          %p567 = scmp.lt.s32.totalorder %s42, 1
          %s568 = scalar_select %p567, %s42, 1
          %p569 = scmp.lt.s32.totalorder %s43, 1
          %s570 = scalar_select %p569, %s43, 1
          %s571 = smul.addr %s568, 2
          %s572 = sadd.s32 %s570, %s571
          %s573 = smul.addr %s572, 8
          %s574 = scalar_lea.vmem %s0, %s573
        $region80: #{rpe_transformer_layer.1} parent=75 // pred_fallthru
          _
        // Predicated region
        $region81: #{rpe_transformer_layer.1} parent=75 // pred_check
          %p575 = pneg %p95
        $region82: #{rpe_transformer_layer.1} parent=75 // pred_check_branch
          %577 = sbr.rel (%p575) target = $region84
        $region83: #{rpe_transformer_layer.1} parent=75 // pred_region
          %p578 = scmp.lt.s32.totalorder %s42, 1
          %s579 = scalar_select %p578, %s42, 1
          %s580 = smul.addr %s579, 2
          %s581 = smul.addr %s580, 8
          %s582 = scalar_lea.vmem %s1, %s581
        $region84: #{rpe_transformer_layer.1} parent=75 // pred_fallthru
          _
        // Predicated region
        $region85: #{rpe_transformer_layer.1} parent=75 // pred_check
          %p583 = pneg %p123
        $region86: #{rpe_transformer_layer.1} parent=75 // pred_check_branch
          %585 = sbr.rel (%p583) target = $region88
        $region87: #{rpe_transformer_layer.1} parent=75 // pred_region
          %s586 = sand.u32 %s113, 1
          %s587 = scalar_lea.sflag [#allocation3], %s586
          %s588 = sand.u32 %s113, 1
          %s589 = smul.addr %s588, 128
          %s590 = scalar_lea.vmem [#allocation2], %s589
          %s591 = smul.u32 8, %s43
          %593 = vsyncadd %s587, 0
          %s594 = smul.addr %s591, 2
          %s595 = smul.addr %s42, 32
          %s596 = sadd.s32 %s594, %s595
          %s597 = smul.addr %s596, 8
          %s598 = scalar_lea.hbm %s2, %s597
          %s599 = sshll.u32 %s598, 4
          %s600 = int_to_ptr.hbm [resolvable:$true] %s599
          %s601 = sshll.u32 %s590, 4
          %s602 = int_to_ptr.vmem [resolvable:$true] %s601
          %607 = dma.hbm_to_vmem [thread:$0]  %s600, 2048, %s602, %s587, 128, 128, 8
        $region88: #{rpe_transformer_layer.1} parent=75 // pred_fallthru
          _
      $region76: #{rpe_transformer_layer.1} parent=5 // pred_fallthru
        _
      %p608 = scmp.le.s32.totalorder 1, %s35
      %p609 = scmp.lt.s32.totalorder %s35, 5
      %p610 = pnand %p608, %p609
      %p611 = pneg %p610
      // Predicated region
      $region89: #{rpe_transformer_layer.1} parent=5 // pred_check
        _
      $region90: #{rpe_transformer_layer.1} parent=5 // pred_check_branch
        %613 = sbr.rel (%p610) target = $region92
      $region91: #{rpe_transformer_layer.1} parent=5 // pred_region
        %s614 = ssub.s32 %s35, 1
        %s615 = sand.u32 %s116, 1
        %s616 = scalar_lea.sflag [#allocation3], %s615
        %s617 = sand.u32 %s116, 1
        %s618 = smul.addr %s617, 128
        %s619 = scalar_lea.vmem [#allocation2], %s618
        // Predicated region
        $region93: #{rpe_transformer_layer.1} parent=91 // pred_check
          %p620 = pneg %p129
        $region94: #{rpe_transformer_layer.1} parent=91 // pred_check_branch
          %622 = sbr.rel (%p620) target = $region96
        $region95: #{rpe_transformer_layer.1} parent=91 // pred_region
          %624 = dma.done %s616, 2048
        $region96: #{rpe_transformer_layer.1} parent=91 // pred_fallthru
          _
        %p625 = scmp.lt.s32.totalorder %s44, 1
        %s626 = scalar_select %p625, %s44, 1
        %p627 = scmp.lt.s32.totalorder %s45, 1
        %s628 = scalar_select %p627, %s45, 1
        %s629 = smul.addr %s626, 2
        %s630 = sadd.s32 %s628, %s629
        %s631 = smul.addr %s630, 8
        %s632 = scalar_lea.vmem %s0, %s631
        %p633 = pneg %p75
        %p634 = pneg %p72
        %p635 = scmp.lt.s32.totalorder %s44, 1
        %s636 = scalar_select %p635, %s44, 1
        %s637 = smul.addr %s636, 2
        %s638 = smul.addr %s637, 8
        %s639 = scalar_lea.vmem %s1, %s638
        %p640 = pneg %p101
        %p641 = pneg %p98
        %s642 = sand.u32 %s116, 1
        %s643 = scalar_lea.sflag [#allocation3], %s642
        %s644 = sand.u32 %s116, 1
        %s645 = smul.addr %s644, 128
        %s646 = scalar_lea.vmem [#allocation2], %s645
        %p647 = pneg %p129
        %p648 = pneg %p126
        %p649 = pneg %p150
        %p650 = pneg %p147
        %p651 = pneg %p171
        %p652 = pneg %p168
        %p653 = pneg %p192
        %p654 = pneg %p189
        %p655 = pneg %p213
        %p656 = pneg %p210
        %p657 = pneg %p234
        %p658 = pneg %p231
        %p659 = pneg %p255
        %p660 = pneg %p252
        %p661 = pneg %p276
        %p662 = pneg %p273
        %p663 = pneg %p297
        %p664 = pneg %p294
        %p665 = pneg %p318
        %p666 = pneg %p315
        %p667 = pneg %p339
        %p668 = pneg %p336
        %p669 = pneg %p360
        %p670 = pneg %p357
        %p671 = pneg %p381
        %p672 = pneg %p378
        %p673 = pneg %p402
        %p674 = pneg %p399
        %p675 = pneg %p423
        %p676 = pneg %p420
        %p677 = pneg %p444
        %p678 = pneg %p441
        %p679 = pneg %p472
        %p680 = pneg %p469
        %s681 = sand.u32 %s459, 1
        %s682 = scalar_lea.sflag [#allocation4], %s681
        %s683 = sand.u32 %s459, 1
        %s684 = smul.addr %s683, 8
        %s685 = scalar_lea.vmem [#allocation5], %s684
        %p686 = pneg %p500
        %p687 = pneg %p497
        %s688 = sand.u32 %s487, 1
        %s689 = scalar_lea.sflag [#allocation7], %s688
        %s690 = sand.u32 %s487, 1
        %s691 = smul.addr %s690, 32
        %s692 = scalar_lea.vmem [#allocation6], %s691
        %p693 = scmp.lt.s32.totalorder %s44, 1
        %s694 = scalar_select %p693, %s44, 1
        %p695 = scmp.lt.s32.totalorder %s45, 1
        %s696 = scalar_select %p695, %s45, 1
        %s697 = smul.addr %s694, 2
        %s698 = sadd.s32 %s696, %s697
        %s699 = smul.addr %s698, 8
        %s700 = scalar_lea.vmem %s0, %s699
        %p701 = scmp.lt.s32.totalorder %s44, 1
        %s702 = scalar_select %p701, %s44, 1
        %s703 = smul.addr %s702, 2
        %s704 = smul.addr %s703, 8
        %s705 = scalar_lea.vmem %s1, %s704
        %s706 = smul.u32 8, %s45
        %v707 = vld [vmem:[%s700] sm:$0xff]
        %v708 = vld [vmem:[%s705] sm:$0xff]
        %v709 = vld [vmem:[%s705 + $0x8] sm:$0xff]
        %v710 = vld [vmem:[%s619] sm:$0xff]
        %v711 = vld [vmem:[%s619 + $0x8] sm:$0xff]
        %v712 = vld [vmem:[%s619 + $0x10] sm:$0xff]
        %v713 = vld [vmem:[%s619 + $0x18] sm:$0xff]
        %v714 = vld [vmem:[%s619 + $0x20] sm:$0xff]
        %v715 = vld [vmem:[%s619 + $0x28] sm:$0xff]
        %v716 = vld [vmem:[%s619 + $0x30] sm:$0xff]
        %v717 = vld [vmem:[%s619 + $0x38] sm:$0xff]
        %v718 = vld [vmem:[%s619 + $0x40] sm:$0xff]
        %v719 = vld [vmem:[%s619 + $0x48] sm:$0xff]
        %v720 = vld [vmem:[%s619 + $0x50] sm:$0xff]
        %v721 = vld [vmem:[%s619 + $0x58] sm:$0xff]
        %v722 = vld [vmem:[%s619 + $0x60] sm:$0xff]
        %v723 = vld [vmem:[%s619 + $0x68] sm:$0xff]
        %v724 = vld [vmem:[%s619 + $0x70] sm:$0xff]
        %v725 = vld [vmem:[%s619 + $0x78] sm:$0xff]
        %v726 = vld [vmem:[%s3] sm:$0xff]
        %v727 = vld [vmem:[%s3 + $0x8] sm:$0xff]
        %v728 = vld [vmem:[%s3 + $0x10] sm:$0xff]
        %v729 = vld [vmem:[%s3 + $0x18] sm:$0xff]
        %v730 = vld [vmem:[%s4] sm:$0x1]
        %v732 = vperm.slane %v730, 0
        %vm734 = vcmask 261120
        %v736 = vsel %vm734, %v707, 0
        %738 = vmatpush.msra.mxu0 0.0
        %739 = vmatpush.msra.mxu0 0.0
        %740 = vmatpush.msra.mxu0 0.0
        %741 = vmatpush.msra.mxu0 0.0
        %742 = vmatpush.msra.mxu0 0.0
        %743 = vmatpush.msra.mxu0 0.0
        %744 = vmatpush.msra.mxu0 0.0
        %745 = vmatpush.msra.mxu0 0.0
        %746 = vmatpush.msra.mxu0 0.0
        %747 = vmatpush.msra.mxu0 0.0
        %748 = vmatpush.msra.mxu0 0.0
        %749 = vmatpush.msra.mxu0 0.0
        %750 = vmatpush.msra.mxu0 %v729
        %751 = vmatpush.msra.mxu0 %v728
        %752 = vmatpush.msra.mxu0 %v727
        %753 = vmatpush.msra.mxu0 %v726
        %754 = vmatmul.f32.gmra.mxu0 %v736
        %v755 = vpop.f32.mrf.mxu0
        %v756 = vadd.f32 %v732, %v755
        %757 = vdwg.mxu0
        %v758 = vld [vmem:[%s5] sm:$0xff]
        %v759 = vld [vmem:[%s5 + $0x8] sm:$0xff]
        %v760 = vld [vmem:[%s5 + $0x10] sm:$0xff]
        %v761 = vld [vmem:[%s5 + $0x18] sm:$0xff]
        %v762 = vld [vmem:[%s6] sm:$0x1]
        %v764 = vperm.slane %v762, 0
        %v767 = vsel %vm734, %v708, 0
        %v770 = vsel %vm734, %v709, 0
        %772 = vmatpush.msra.mxu0 0.0
        %773 = vmatpush.msra.mxu0 0.0
        %774 = vmatpush.msra.mxu0 0.0
        %775 = vmatpush.msra.mxu0 0.0
        %776 = vmatpush.msra.mxu0 0.0
        %777 = vmatpush.msra.mxu0 0.0
        %778 = vmatpush.msra.mxu0 0.0
        %779 = vmatpush.msra.mxu0 0.0
        %780 = vmatpush.msra.mxu0 0.0
        %781 = vmatpush.msra.mxu0 0.0
        %782 = vmatpush.msra.mxu0 0.0
        %783 = vmatpush.msra.mxu0 0.0
        %784 = vmatpush.msra.mxu0 %v761
        %785 = vmatpush.msra.mxu0 %v760
        %786 = vmatpush.msra.mxu0 %v759
        %787 = vmatpush.msra.mxu0 %v758
        %788 = vmatmul.f32.gmra.mxu0 %v767
        %v789 = vpop.f32.mrf.mxu0
        %v790 = vadd.f32 %v764, %v789
        %791 = vmatmul.f32.gmra.mxu0 %v770
        %v792 = vpop.f32.mrf.mxu0
        %v793 = vadd.f32 %v764, %v792
        %794 = vdwg.mxu0
        %v795 = vld [vmem:[%s7] sm:$0xff]
        %v796 = vld [vmem:[%s7 + $0x8] sm:$0xff]
        %v797 = vld [vmem:[%s7 + $0x10] sm:$0xff]
        %v798 = vld [vmem:[%s7 + $0x18] sm:$0xff]
        %v800 = vsel %vm734, %v756, 0
        %802 = vmatpush.msra.mxu0 0.0
        %803 = vmatpush.msra.mxu0 0.0
        %804 = vmatpush.msra.mxu0 0.0
        %805 = vmatpush.msra.mxu0 0.0
        %806 = vmatpush.msra.mxu0 0.0
        %807 = vmatpush.msra.mxu0 0.0
        %808 = vmatpush.msra.mxu0 0.0
        %809 = vmatpush.msra.mxu0 0.0
        %810 = vmatpush.msra.mxu0 0.0
        %811 = vmatpush.msra.mxu0 0.0
        %812 = vmatpush.msra.mxu0 0.0
        %813 = vmatpush.msra.mxu0 0.0
        %814 = vmatpush.msra.mxu0 %v798
        %815 = vmatpush.msra.mxu0 %v797
        %816 = vmatpush.msra.mxu0 %v796
        %817 = vmatpush.msra.mxu0 %v795
        %818 = vmatmul.f32.gmra.mxu0 %v800
        %v819 = vpop.f32.mrf.mxu0
        %v820 = vadd.f32 0.0, %v819
        %821 = vdwg.mxu0
        %823 = vrot.lane.b32.xlu0 %v820, 96
        %v824 = vpop.permute.xlu0 %823
        %826 = vrot.lane.b32.xlu0 %v820, 64
        %v827 = vpop.permute.xlu0 %826
        %829 = vrot.lane.b32.xlu0 %v820, 32
        %v830 = vpop.permute.xlu0 %829
        %v832 = vrot.slane %v827, 4
        %vm833 = vcmask 1047556
        %v834 = vsel %vm833, %v832, %v820
        %v835 = vrot.slane %v820, 4
        %v836 = vsel %vm833, %v827, %v835
        %v838 = vunpack.c.l.s4 1983009808
        %v839 = vunpack.c.0.s8 %v838
        %v840 = vperm.slane %v834, %v839
        %v842 = vunpack.c.l.s4 1983009808
        %v843 = vunpack.c.0.s8 %v842
        %v844 = vperm.slane %v836, %v843
        %v845 = vrot.slane %v830, 4
        %v846 = vsel %vm833, %v845, %v824
        %v847 = vrot.slane %v824, 4
        %v848 = vsel %vm833, %v830, %v847
        %v850 = vunpack.c.l.s4 1983009808
        %v851 = vunpack.c.0.s8 %v850
        %v852 = vperm.slane %v846, %v851
        %v854 = vunpack.c.l.s4 1983009808
        %v855 = vunpack.c.0.s8 %v854
        %v856 = vperm.slane %v848, %v855
        %v857 = vrot.slane %v852, 4
        %v858 = vsel %vm833, %v857, %v840
        %v859 = vrot.slane %v840, 4
        %v860 = vsel %vm833, %v852, %v859
        %v862 = vunpack.c.l.s4 1934713408
        %v863 = vunpack.c.0.s8 %v862
        %v864 = vperm.slane %v858, %v863
        %v866 = vunpack.c.l.s4 1934713408
        %v867 = vunpack.c.0.s8 %v866
        %v868 = vperm.slane %v860, %v867
        %v869 = vrot.slane %v856, 4
        %v870 = vsel %vm833, %v869, %v844
        %v871 = vrot.slane %v844, 4
        %v872 = vsel %vm833, %v856, %v871
        %v874 = vunpack.c.l.s4 1934713408
        %v875 = vunpack.c.0.s8 %v874
        %v876 = vperm.slane %v870, %v875
        %v878 = vunpack.c.l.s4 1934713408
        %v879 = vunpack.c.0.s8 %v878
        %v880 = vperm.slane %v872, %v879
        %v881 = vrot.slane %v864, 4
        %v882 = vsel %vm833, 0.0, %v881
        %v883 = vrot.slane %v868, 4
        %v884 = vsel %vm833, 0.0, %v883
        %v885 = vrot.slane %v876, 4
        %v886 = vsel %vm833, 0.0, %v885
        %v887 = vrot.slane %v880, 4
        %v888 = vsel %vm833, 0.0, %v887
        %889 = vrot.lane.b32.xlu0 %v756, 120
        %v890 = vpop.permute.xlu0 %889
        %892 = vrot.lane.b32.xlu0 %v756, 112
        %v893 = vpop.permute.xlu0 %892
        %895 = vrot.lane.b32.xlu0 %v756, 104
        %v896 = vpop.permute.xlu0 %895
        %v898 = vrot.slane %v893, 4
        %v899 = vsel %vm833, %v898, %v756
        %v900 = vrot.slane %v756, 4
        %v901 = vsel %vm833, %v893, %v900
        %v903 = vunpack.c.l.s4 1983009808
        %v904 = vunpack.c.0.s8 %v903
        %v905 = vperm.slane %v899, %v904
        %v907 = vunpack.c.l.s4 1983009808
        %v908 = vunpack.c.0.s8 %v907
        %v909 = vperm.slane %v901, %v908
        %v910 = vrot.slane %v896, 4
        %v911 = vsel %vm833, %v910, %v890
        %v912 = vrot.slane %v890, 4
        %v913 = vsel %vm833, %v896, %v912
        %v915 = vunpack.c.l.s4 1983009808
        %v916 = vunpack.c.0.s8 %v915
        %v917 = vperm.slane %v911, %v916
        %v919 = vunpack.c.l.s4 1983009808
        %v920 = vunpack.c.0.s8 %v919
        %v921 = vperm.slane %v913, %v920
        %v922 = vrot.slane %v917, 4
        %v923 = vsel %vm833, %v922, %v905
        %v924 = vrot.slane %v905, 4
        %v925 = vsel %vm833, %v917, %v924
        %v927 = vunpack.c.l.s4 1934713408
        %v928 = vunpack.c.0.s8 %v927
        %v929 = vperm.slane %v923, %v928
        %v931 = vunpack.c.l.s4 1934713408
        %v932 = vunpack.c.0.s8 %v931
        %v933 = vperm.slane %v925, %v932
        %v934 = vrot.slane %v921, 4
        %v935 = vsel %vm833, %v934, %v909
        %v936 = vrot.slane %v909, 4
        %v937 = vsel %vm833, %v921, %v936
        %v939 = vunpack.c.l.s4 1934713408
        %v940 = vunpack.c.0.s8 %v939
        %v941 = vperm.slane %v935, %v940
        %v943 = vunpack.c.l.s4 1934713408
        %v944 = vunpack.c.0.s8 %v943
        %v945 = vperm.slane %v937, %v944
        %v946 = vrot.slane %v929, 4
        %v947 = vsel %vm833, 0.0, %v946
        %v948 = vrot.slane %v933, 4
        %v949 = vsel %vm833, 0.0, %v948
        %v950 = vrot.slane %v941, 4
        %v951 = vsel %vm833, 0.0, %v950
        %v952 = vrot.slane %v945, 4
        %v953 = vsel %vm833, 0.0, %v952
        %v954 = vsel %vm833, %v948, %v929
        %v956 = vunpack.c.l.s4 1983009808
        %v957 = vunpack.c.0.s8 %v956
        %v958 = vperm.slane %v954, %v957
        %v959 = vrot.slane %v949, 4
        %v960 = vsel %vm833, %v959, %v947
        %v962 = vunpack.c.l.s4 1983009808
        %v963 = vunpack.c.0.s8 %v962
        %v964 = vperm.slane %v960, %v963
        %v965 = vsel %vm833, %v952, %v941
        %v967 = vunpack.c.l.s4 1983009808
        %v968 = vunpack.c.0.s8 %v967
        %v969 = vperm.slane %v965, %v968
        %v970 = vrot.slane %v953, 4
        %v971 = vsel %vm833, %v970, %v951
        %v973 = vunpack.c.l.s4 1983009808
        %v974 = vunpack.c.0.s8 %v973
        %v975 = vperm.slane %v971, %v974
        %v976 = vrot.slane %v964, 4
        %v977 = vsel %vm833, %v976, %v958
        %v978 = vrot.slane %v958, 4
        %v979 = vsel %vm833, %v964, %v978
        %v981 = vunpack.c.l.s4 1934713408
        %v982 = vunpack.c.0.s8 %v981
        %v983 = vperm.slane %v977, %v982
        %v985 = vunpack.c.l.s4 1934713408
        %v986 = vunpack.c.0.s8 %v985
        %v987 = vperm.slane %v979, %v986
        %v988 = vrot.slane %v975, 4
        %v989 = vsel %vm833, %v988, %v969
        %v990 = vrot.slane %v969, 4
        %v991 = vsel %vm833, %v975, %v990
        %v993 = vunpack.c.l.s4 1934713408
        %v994 = vunpack.c.0.s8 %v993
        %v995 = vperm.slane %v989, %v994
        %v997 = vunpack.c.l.s4 1934713408
        %v998 = vunpack.c.0.s8 %v997
        %v999 = vperm.slane %v991, %v998
        %v1000 = vrot.slane %v995, 4
        %v1001 = vsel %vm833, %v1000, %v983
        %v1002 = vrot.slane %v983, 4
        %v1003 = vsel %vm833, %v995, %v1002
        %v1004 = vrot.slane %v999, 4
        %v1005 = vsel %vm833, %v1004, %v987
        %v1006 = vrot.slane %v987, 4
        %v1007 = vsel %vm833, %v999, %v1006
        %1010 = vrot.lane.b32.xlu0 %v790, 120
        %v1011 = vpop.permute.xlu0 %1010
        %1012 = vrot.lane.b32.xlu0 %v793, 120
        %v1013 = vpop.permute.xlu0 %1012
        %1016 = vrot.lane.b32.xlu0 %v790, 112
        %v1017 = vpop.permute.xlu0 %1016
        %1018 = vrot.lane.b32.xlu0 %v793, 112
        %v1019 = vpop.permute.xlu0 %1018
        %1022 = vrot.lane.b32.xlu0 %v790, 104
        %v1023 = vpop.permute.xlu0 %1022
        %1024 = vrot.lane.b32.xlu0 %v793, 104
        %v1025 = vpop.permute.xlu0 %1024
        %v1028 = vrot.slane %v1017, 4
        %v1029 = vsel %vm833, %v1028, %v790
        %v1030 = vrot.slane %v790, 4
        %v1031 = vsel %vm833, %v1017, %v1030
        %v1033 = vunpack.c.l.s4 1983009808
        %v1034 = vunpack.c.0.s8 %v1033
        %v1035 = vperm.slane %v1029, %v1034
        %v1037 = vunpack.c.l.s4 1983009808
        %v1038 = vunpack.c.0.s8 %v1037
        %v1039 = vperm.slane %v1031, %v1038
        %v1040 = vrot.slane %v1023, 4
        %v1041 = vsel %vm833, %v1040, %v1011
        %v1042 = vrot.slane %v1011, 4
        %v1043 = vsel %vm833, %v1023, %v1042
        %v1045 = vunpack.c.l.s4 1983009808
        %v1046 = vunpack.c.0.s8 %v1045
        %v1047 = vperm.slane %v1041, %v1046
        %v1049 = vunpack.c.l.s4 1983009808
        %v1050 = vunpack.c.0.s8 %v1049
        %v1051 = vperm.slane %v1043, %v1050
        %v1052 = vrot.slane %v1047, 4
        %v1053 = vsel %vm833, %v1052, %v1035
        %v1054 = vrot.slane %v1035, 4
        %v1055 = vsel %vm833, %v1047, %v1054
        %v1057 = vunpack.c.l.s4 1934713408
        %v1058 = vunpack.c.0.s8 %v1057
        %v1059 = vperm.slane %v1053, %v1058
        %v1061 = vunpack.c.l.s4 1934713408
        %v1062 = vunpack.c.0.s8 %v1061
        %v1063 = vperm.slane %v1055, %v1062
        %v1064 = vrot.slane %v1051, 4
        %v1065 = vsel %vm833, %v1064, %v1039
        %v1066 = vrot.slane %v1039, 4
        %v1067 = vsel %vm833, %v1051, %v1066
        %v1069 = vunpack.c.l.s4 1934713408
        %v1070 = vunpack.c.0.s8 %v1069
        %v1071 = vperm.slane %v1065, %v1070
        %v1073 = vunpack.c.l.s4 1934713408
        %v1074 = vunpack.c.0.s8 %v1073
        %v1075 = vperm.slane %v1067, %v1074
        %v1076 = vrot.slane %v1059, 4
        %v1077 = vsel %vm833, 0.0, %v1076
        %v1078 = vrot.slane %v1063, 4
        %v1079 = vsel %vm833, 0.0, %v1078
        %v1080 = vrot.slane %v1071, 4
        %v1081 = vsel %vm833, 0.0, %v1080
        %v1082 = vrot.slane %v1075, 4
        %v1083 = vsel %vm833, 0.0, %v1082
        %v1084 = vrot.slane %v1019, 4
        %v1085 = vsel %vm833, %v1084, %v793
        %v1086 = vrot.slane %v793, 4
        %v1087 = vsel %vm833, %v1019, %v1086
        %v1089 = vunpack.c.l.s4 1983009808
        %v1090 = vunpack.c.0.s8 %v1089
        %v1091 = vperm.slane %v1085, %v1090
        %v1093 = vunpack.c.l.s4 1983009808
        %v1094 = vunpack.c.0.s8 %v1093
        %v1095 = vperm.slane %v1087, %v1094
        %v1096 = vrot.slane %v1025, 4
        %v1097 = vsel %vm833, %v1096, %v1013
        %v1098 = vrot.slane %v1013, 4
        %v1099 = vsel %vm833, %v1025, %v1098
        %v1101 = vunpack.c.l.s4 1983009808
        %v1102 = vunpack.c.0.s8 %v1101
        %v1103 = vperm.slane %v1097, %v1102
        %v1105 = vunpack.c.l.s4 1983009808
        %v1106 = vunpack.c.0.s8 %v1105
        %v1107 = vperm.slane %v1099, %v1106
        %v1108 = vrot.slane %v1103, 4
        %v1109 = vsel %vm833, %v1108, %v1091
        %v1110 = vrot.slane %v1091, 4
        %v1111 = vsel %vm833, %v1103, %v1110
        %v1113 = vunpack.c.l.s4 1934713408
        %v1114 = vunpack.c.0.s8 %v1113
        %v1115 = vperm.slane %v1109, %v1114
        %v1117 = vunpack.c.l.s4 1934713408
        %v1118 = vunpack.c.0.s8 %v1117
        %v1119 = vperm.slane %v1111, %v1118
        %v1120 = vrot.slane %v1107, 4
        %v1121 = vsel %vm833, %v1120, %v1095
        %v1122 = vrot.slane %v1095, 4
        %v1123 = vsel %vm833, %v1107, %v1122
        %v1125 = vunpack.c.l.s4 1934713408
        %v1126 = vunpack.c.0.s8 %v1125
        %v1127 = vperm.slane %v1121, %v1126
        %v1129 = vunpack.c.l.s4 1934713408
        %v1130 = vunpack.c.0.s8 %v1129
        %v1131 = vperm.slane %v1123, %v1130
        %v1132 = vrot.slane %v1115, 4
        %v1133 = vsel %vm833, 0.0, %v1132
        %v1134 = vrot.slane %v1119, 4
        %v1135 = vsel %vm833, 0.0, %v1134
        %v1136 = vrot.slane %v1127, 4
        %v1137 = vsel %vm833, 0.0, %v1136
        %v1138 = vrot.slane %v1131, 4
        %v1139 = vsel %vm833, 0.0, %v1138
        %v1140 = vsel %vm833, %v1078, %v1059
        %v1142 = vunpack.c.l.s4 1983009808
        %v1143 = vunpack.c.0.s8 %v1142
        %v1144 = vperm.slane %v1140, %v1143
        %v1145 = vrot.slane %v1079, 4
        %v1146 = vsel %vm833, %v1145, %v1077
        %v1148 = vunpack.c.l.s4 1983009808
        %v1149 = vunpack.c.0.s8 %v1148
        %v1150 = vperm.slane %v1146, %v1149
        %v1151 = vsel %vm833, %v1082, %v1071
        %v1153 = vunpack.c.l.s4 1983009808
        %v1154 = vunpack.c.0.s8 %v1153
        %v1155 = vperm.slane %v1151, %v1154
        %v1156 = vrot.slane %v1083, 4
        %v1157 = vsel %vm833, %v1156, %v1081
        %v1159 = vunpack.c.l.s4 1983009808
        %v1160 = vunpack.c.0.s8 %v1159
        %v1161 = vperm.slane %v1157, %v1160
        %v1162 = vrot.slane %v1150, 4
        %v1163 = vsel %vm833, %v1162, %v1144
        %v1164 = vrot.slane %v1144, 4
        %v1165 = vsel %vm833, %v1150, %v1164
        %v1167 = vunpack.c.l.s4 1934713408
        %v1168 = vunpack.c.0.s8 %v1167
        %v1169 = vperm.slane %v1163, %v1168
        %v1171 = vunpack.c.l.s4 1934713408
        %v1172 = vunpack.c.0.s8 %v1171
        %v1173 = vperm.slane %v1165, %v1172
        %v1174 = vrot.slane %v1161, 4
        %v1175 = vsel %vm833, %v1174, %v1155
        %v1176 = vrot.slane %v1155, 4
        %v1177 = vsel %vm833, %v1161, %v1176
        %v1179 = vunpack.c.l.s4 1934713408
        %v1180 = vunpack.c.0.s8 %v1179
        %v1181 = vperm.slane %v1175, %v1180
        %v1183 = vunpack.c.l.s4 1934713408
        %v1184 = vunpack.c.0.s8 %v1183
        %v1185 = vperm.slane %v1177, %v1184
        %v1186 = vrot.slane %v1181, 4
        %v1187 = vsel %vm833, %v1186, %v1169
        %v1188 = vrot.slane %v1169, 4
        %v1189 = vsel %vm833, %v1181, %v1188
        %v1190 = vrot.slane %v1185, 4
        %v1191 = vsel %vm833, %v1190, %v1173
        %v1192 = vrot.slane %v1173, 4
        %v1193 = vsel %vm833, %v1185, %v1192
        %v1194 = vsel %vm833, %v1134, %v1115
        %v1196 = vunpack.c.l.s4 1983009808
        %v1197 = vunpack.c.0.s8 %v1196
        %v1198 = vperm.slane %v1194, %v1197
        %v1199 = vrot.slane %v1135, 4
        %v1200 = vsel %vm833, %v1199, %v1133
        %v1202 = vunpack.c.l.s4 1983009808
        %v1203 = vunpack.c.0.s8 %v1202
        %v1204 = vperm.slane %v1200, %v1203
        %v1205 = vsel %vm833, %v1138, %v1127
        %v1207 = vunpack.c.l.s4 1983009808
        %v1208 = vunpack.c.0.s8 %v1207
        %v1209 = vperm.slane %v1205, %v1208
        %v1210 = vrot.slane %v1139, 4
        %v1211 = vsel %vm833, %v1210, %v1137
        %v1213 = vunpack.c.l.s4 1983009808
        %v1214 = vunpack.c.0.s8 %v1213
        %v1215 = vperm.slane %v1211, %v1214
        %v1216 = vrot.slane %v1204, 4
        %v1217 = vsel %vm833, %v1216, %v1198
        %v1218 = vrot.slane %v1198, 4
        %v1219 = vsel %vm833, %v1204, %v1218
        %v1221 = vunpack.c.l.s4 1934713408
        %v1222 = vunpack.c.0.s8 %v1221
        %v1223 = vperm.slane %v1217, %v1222
        %v1225 = vunpack.c.l.s4 1934713408
        %v1226 = vunpack.c.0.s8 %v1225
        %v1227 = vperm.slane %v1219, %v1226
        %v1228 = vrot.slane %v1215, 4
        %v1229 = vsel %vm833, %v1228, %v1209
        %v1230 = vrot.slane %v1209, 4
        %v1231 = vsel %vm833, %v1215, %v1230
        %v1233 = vunpack.c.l.s4 1934713408
        %v1234 = vunpack.c.0.s8 %v1233
        %v1235 = vperm.slane %v1229, %v1234
        %v1237 = vunpack.c.l.s4 1934713408
        %v1238 = vunpack.c.0.s8 %v1237
        %v1239 = vperm.slane %v1231, %v1238
        %v1240 = vrot.slane %v1235, 4
        %v1241 = vsel %vm833, %v1240, %v1223
        %v1242 = vrot.slane %v1223, 4
        %v1243 = vsel %vm833, %v1235, %v1242
        %v1244 = vrot.slane %v1239, 4
        %v1245 = vsel %vm833, %v1244, %v1227
        %v1246 = vrot.slane %v1227, 4
        %v1247 = vsel %vm833, %v1239, %v1246
        %1248 = vrot.lane.b32.xlu0 %v790, 96
        %v1249 = vpop.permute.xlu0 %1248
        %1250 = vrot.lane.b32.xlu0 %v793, 96
        %v1251 = vpop.permute.xlu0 %1250
        %1252 = vrot.lane.b32.xlu0 %v1011, 96
        %v1253 = vpop.permute.xlu0 %1252
        %1254 = vrot.lane.b32.xlu0 %v1013, 96
        %v1255 = vpop.permute.xlu0 %1254
        %1256 = vrot.lane.b32.xlu0 %v1017, 96
        %v1257 = vpop.permute.xlu0 %1256
        %1258 = vrot.lane.b32.xlu0 %v1019, 96
        %v1259 = vpop.permute.xlu0 %1258
        %1260 = vrot.lane.b32.xlu0 %v1023, 96
        %v1261 = vpop.permute.xlu0 %1260
        %1262 = vrot.lane.b32.xlu0 %v1025, 96
        %v1263 = vpop.permute.xlu0 %1262
        %v1272 = vrot.slane %v1257, 4
        %v1273 = vsel %vm833, %v1272, %v1249
        %v1274 = vrot.slane %v1249, 4
        %v1275 = vsel %vm833, %v1257, %v1274
        %v1277 = vunpack.c.l.s4 1983009808
        %v1278 = vunpack.c.0.s8 %v1277
        %v1279 = vperm.slane %v1273, %v1278
        %v1281 = vunpack.c.l.s4 1983009808
        %v1282 = vunpack.c.0.s8 %v1281
        %v1283 = vperm.slane %v1275, %v1282
        %v1284 = vrot.slane %v1261, 4
        %v1285 = vsel %vm833, %v1284, %v1253
        %v1286 = vrot.slane %v1253, 4
        %v1287 = vsel %vm833, %v1261, %v1286
        %v1289 = vunpack.c.l.s4 1983009808
        %v1290 = vunpack.c.0.s8 %v1289
        %v1291 = vperm.slane %v1285, %v1290
        %v1293 = vunpack.c.l.s4 1983009808
        %v1294 = vunpack.c.0.s8 %v1293
        %v1295 = vperm.slane %v1287, %v1294
        %v1296 = vrot.slane %v1291, 4
        %v1297 = vsel %vm833, %v1296, %v1279
        %v1298 = vrot.slane %v1279, 4
        %v1299 = vsel %vm833, %v1291, %v1298
        %v1301 = vunpack.c.l.s4 1934713408
        %v1302 = vunpack.c.0.s8 %v1301
        %v1303 = vperm.slane %v1297, %v1302
        %v1305 = vunpack.c.l.s4 1934713408
        %v1306 = vunpack.c.0.s8 %v1305
        %v1307 = vperm.slane %v1299, %v1306
        %v1308 = vrot.slane %v1295, 4
        %v1309 = vsel %vm833, %v1308, %v1283
        %v1310 = vrot.slane %v1283, 4
        %v1311 = vsel %vm833, %v1295, %v1310
        %v1313 = vunpack.c.l.s4 1934713408
        %v1314 = vunpack.c.0.s8 %v1313
        %v1315 = vperm.slane %v1309, %v1314
        %v1317 = vunpack.c.l.s4 1934713408
        %v1318 = vunpack.c.0.s8 %v1317
        %v1319 = vperm.slane %v1311, %v1318
        %v1320 = vrot.slane %v1303, 4
        %v1321 = vsel %vm833, 0.0, %v1320
        %v1322 = vrot.slane %v1307, 4
        %v1323 = vsel %vm833, 0.0, %v1322
        %v1324 = vrot.slane %v1315, 4
        %v1325 = vsel %vm833, 0.0, %v1324
        %v1326 = vrot.slane %v1319, 4
        %v1327 = vsel %vm833, 0.0, %v1326
        %v1328 = vrot.slane %v1259, 4
        %v1329 = vsel %vm833, %v1328, %v1251
        %v1330 = vrot.slane %v1251, 4
        %v1331 = vsel %vm833, %v1259, %v1330
        %v1333 = vunpack.c.l.s4 1983009808
        %v1334 = vunpack.c.0.s8 %v1333
        %v1335 = vperm.slane %v1329, %v1334
        %v1337 = vunpack.c.l.s4 1983009808
        %v1338 = vunpack.c.0.s8 %v1337
        %v1339 = vperm.slane %v1331, %v1338
        %v1340 = vrot.slane %v1263, 4
        %v1341 = vsel %vm833, %v1340, %v1255
        %v1342 = vrot.slane %v1255, 4
        %v1343 = vsel %vm833, %v1263, %v1342
        %v1345 = vunpack.c.l.s4 1983009808
        %v1346 = vunpack.c.0.s8 %v1345
        %v1347 = vperm.slane %v1341, %v1346
        %v1349 = vunpack.c.l.s4 1983009808
        %v1350 = vunpack.c.0.s8 %v1349
        %v1351 = vperm.slane %v1343, %v1350
        %v1352 = vrot.slane %v1347, 4
        %v1353 = vsel %vm833, %v1352, %v1335
        %v1354 = vrot.slane %v1335, 4
        %v1355 = vsel %vm833, %v1347, %v1354
        %v1357 = vunpack.c.l.s4 1934713408
        %v1358 = vunpack.c.0.s8 %v1357
        %v1359 = vperm.slane %v1353, %v1358
        %v1361 = vunpack.c.l.s4 1934713408
        %v1362 = vunpack.c.0.s8 %v1361
        %v1363 = vperm.slane %v1355, %v1362
        %v1364 = vrot.slane %v1351, 4
        %v1365 = vsel %vm833, %v1364, %v1339
        %v1366 = vrot.slane %v1339, 4
        %v1367 = vsel %vm833, %v1351, %v1366
        %v1369 = vunpack.c.l.s4 1934713408
        %v1370 = vunpack.c.0.s8 %v1369
        %v1371 = vperm.slane %v1365, %v1370
        %v1373 = vunpack.c.l.s4 1934713408
        %v1374 = vunpack.c.0.s8 %v1373
        %v1375 = vperm.slane %v1367, %v1374
        %v1376 = vrot.slane %v1359, 4
        %v1377 = vsel %vm833, 0.0, %v1376
        %v1378 = vrot.slane %v1363, 4
        %v1379 = vsel %vm833, 0.0, %v1378
        %v1380 = vrot.slane %v1371, 4
        %v1381 = vsel %vm833, 0.0, %v1380
        %v1382 = vrot.slane %v1375, 4
        %v1383 = vsel %vm833, 0.0, %v1382
        %v1384 = vsel %vm833, %v1322, %v1303
        %v1386 = vunpack.c.l.s4 1983009808
        %v1387 = vunpack.c.0.s8 %v1386
        %v1388 = vperm.slane %v1384, %v1387
        %v1389 = vrot.slane %v1323, 4
        %v1390 = vsel %vm833, %v1389, %v1321
        %v1392 = vunpack.c.l.s4 1983009808
        %v1393 = vunpack.c.0.s8 %v1392
        %v1394 = vperm.slane %v1390, %v1393
        %v1395 = vsel %vm833, %v1326, %v1315
        %v1397 = vunpack.c.l.s4 1983009808
        %v1398 = vunpack.c.0.s8 %v1397
        %v1399 = vperm.slane %v1395, %v1398
        %v1400 = vrot.slane %v1327, 4
        %v1401 = vsel %vm833, %v1400, %v1325
        %v1403 = vunpack.c.l.s4 1983009808
        %v1404 = vunpack.c.0.s8 %v1403
        %v1405 = vperm.slane %v1401, %v1404
        %v1406 = vrot.slane %v1394, 4
        %v1407 = vsel %vm833, %v1406, %v1388
        %v1408 = vrot.slane %v1388, 4
        %v1409 = vsel %vm833, %v1394, %v1408
        %v1411 = vunpack.c.l.s4 1934713408
        %v1412 = vunpack.c.0.s8 %v1411
        %v1413 = vperm.slane %v1407, %v1412
        %v1415 = vunpack.c.l.s4 1934713408
        %v1416 = vunpack.c.0.s8 %v1415
        %v1417 = vperm.slane %v1409, %v1416
        %v1418 = vrot.slane %v1405, 4
        %v1419 = vsel %vm833, %v1418, %v1399
        %v1420 = vrot.slane %v1399, 4
        %v1421 = vsel %vm833, %v1405, %v1420
        %v1423 = vunpack.c.l.s4 1934713408
        %v1424 = vunpack.c.0.s8 %v1423
        %v1425 = vperm.slane %v1419, %v1424
        %v1427 = vunpack.c.l.s4 1934713408
        %v1428 = vunpack.c.0.s8 %v1427
        %v1429 = vperm.slane %v1421, %v1428
        %v1430 = vrot.slane %v1425, 4
        %v1431 = vsel %vm833, %v1430, %v1413
        %v1432 = vrot.slane %v1413, 4
        %v1433 = vsel %vm833, %v1425, %v1432
        %v1434 = vrot.slane %v1429, 4
        %v1435 = vsel %vm833, %v1434, %v1417
        %v1436 = vrot.slane %v1417, 4
        %v1437 = vsel %vm833, %v1429, %v1436
        %v1438 = vsel %vm833, %v1378, %v1359
        %v1440 = vunpack.c.l.s4 1983009808
        %v1441 = vunpack.c.0.s8 %v1440
        %v1442 = vperm.slane %v1438, %v1441
        %v1443 = vrot.slane %v1379, 4
        %v1444 = vsel %vm833, %v1443, %v1377
        %v1446 = vunpack.c.l.s4 1983009808
        %v1447 = vunpack.c.0.s8 %v1446
        %v1448 = vperm.slane %v1444, %v1447
        %v1449 = vsel %vm833, %v1382, %v1371
        %v1451 = vunpack.c.l.s4 1983009808
        %v1452 = vunpack.c.0.s8 %v1451
        %v1453 = vperm.slane %v1449, %v1452
        %v1454 = vrot.slane %v1383, 4
        %v1455 = vsel %vm833, %v1454, %v1381
        %v1457 = vunpack.c.l.s4 1983009808
        %v1458 = vunpack.c.0.s8 %v1457
        %v1459 = vperm.slane %v1455, %v1458
        %v1460 = vrot.slane %v1448, 4
        %v1461 = vsel %vm833, %v1460, %v1442
        %v1462 = vrot.slane %v1442, 4
        %v1463 = vsel %vm833, %v1448, %v1462
        %v1465 = vunpack.c.l.s4 1934713408
        %v1466 = vunpack.c.0.s8 %v1465
        %v1467 = vperm.slane %v1461, %v1466
        %v1469 = vunpack.c.l.s4 1934713408
        %v1470 = vunpack.c.0.s8 %v1469
        %v1471 = vperm.slane %v1463, %v1470
        %v1472 = vrot.slane %v1459, 4
        %v1473 = vsel %vm833, %v1472, %v1453
        %v1474 = vrot.slane %v1453, 4
        %v1475 = vsel %vm833, %v1459, %v1474
        %v1477 = vunpack.c.l.s4 1934713408
        %v1478 = vunpack.c.0.s8 %v1477
        %v1479 = vperm.slane %v1473, %v1478
        %v1481 = vunpack.c.l.s4 1934713408
        %v1482 = vunpack.c.0.s8 %v1481
        %v1483 = vperm.slane %v1475, %v1482
        %v1484 = vrot.slane %v1479, 4
        %v1485 = vsel %vm833, %v1484, %v1467
        %v1486 = vrot.slane %v1467, 4
        %v1487 = vsel %vm833, %v1479, %v1486
        %v1488 = vrot.slane %v1483, 4
        %v1489 = vsel %vm833, %v1488, %v1471
        %v1490 = vrot.slane %v1471, 4
        %v1491 = vsel %vm833, %v1483, %v1490
        %v1493 = vsel %vm734, %v864, 0
        %v1496 = vsel %vm734, %v710, 0
        %v1499 = vsel %vm734, %v711, 0
        %1501 = vmatpush.xpose.msra.mxu0 0.0
        %1502 = vmatpush.xpose.msra.mxu0 0.0
        %1503 = vmatpush.xpose.msra.mxu0 0.0
        %1504 = vmatpush.xpose.msra.mxu0 0.0
        %1505 = vmatpush.xpose.msra.mxu0 0.0
        %1506 = vmatpush.xpose.msra.mxu0 0.0
        %1507 = vmatpush.xpose.msra.mxu0 0.0
        %1508 = vmatpush.xpose.msra.mxu0 0.0
        %1509 = vmatpush.xpose.msra.mxu0 0.0
        %1510 = vmatpush.xpose.msra.mxu0 0.0
        %1511 = vmatpush.xpose.msra.mxu0 0.0
        %1512 = vmatpush.xpose.msra.mxu0 0.0
        %1513 = vmatpush.xpose.msra.mxu0 0.0
        %1514 = vmatpush.xpose.msra.mxu0 0.0
        %1515 = vmatpush.xpose.msra.mxu0 %v1499
        %1516 = vmatpush.xpose.msra.mxu0 %v1496
        %1517 = vmatmul.f32.gmra.mxu0 %v1493
        %v1518 = vpop.f32.mrf.mxu0
        %v1519 = vadd.f32 0.0, %v1518
        %1520 = vdwg.mxu0
        %v1522 = vsel %vm734, %v882, 0
        %v1525 = vsel %vm734, %v712, 0
        %v1528 = vsel %vm734, %v713, 0
        %1530 = vmatpush.xpose.msra.mxu0 0.0
        %1531 = vmatpush.xpose.msra.mxu0 0.0
        %1532 = vmatpush.xpose.msra.mxu0 0.0
        %1533 = vmatpush.xpose.msra.mxu0 0.0
        %1534 = vmatpush.xpose.msra.mxu0 0.0
        %1535 = vmatpush.xpose.msra.mxu0 0.0
        %1536 = vmatpush.xpose.msra.mxu0 0.0
        %1537 = vmatpush.xpose.msra.mxu0 0.0
        %1538 = vmatpush.xpose.msra.mxu0 0.0
        %1539 = vmatpush.xpose.msra.mxu0 0.0
        %1540 = vmatpush.xpose.msra.mxu0 0.0
        %1541 = vmatpush.xpose.msra.mxu0 0.0
        %1542 = vmatpush.xpose.msra.mxu0 0.0
        %1543 = vmatpush.xpose.msra.mxu0 0.0
        %1544 = vmatpush.xpose.msra.mxu0 %v1528
        %1545 = vmatpush.xpose.msra.mxu0 %v1525
        %1546 = vmatmul.f32.gmra.mxu0 %v1522
        %v1547 = vpop.f32.mrf.mxu0
        %v1548 = vadd.f32 0.0, %v1547
        %1549 = vdwg.mxu0
        %v1551 = vsel %vm734, %v868, 0
        %v1554 = vsel %vm734, %v714, 0
        %v1557 = vsel %vm734, %v715, 0
        %1559 = vmatpush.xpose.msra.mxu0 0.0
        %1560 = vmatpush.xpose.msra.mxu0 0.0
        %1561 = vmatpush.xpose.msra.mxu0 0.0
        %1562 = vmatpush.xpose.msra.mxu0 0.0
        %1563 = vmatpush.xpose.msra.mxu0 0.0
        %1564 = vmatpush.xpose.msra.mxu0 0.0
        %1565 = vmatpush.xpose.msra.mxu0 0.0
        %1566 = vmatpush.xpose.msra.mxu0 0.0
        %1567 = vmatpush.xpose.msra.mxu0 0.0
        %1568 = vmatpush.xpose.msra.mxu0 0.0
        %1569 = vmatpush.xpose.msra.mxu0 0.0
        %1570 = vmatpush.xpose.msra.mxu0 0.0
        %1571 = vmatpush.xpose.msra.mxu0 0.0
        %1572 = vmatpush.xpose.msra.mxu0 0.0
        %1573 = vmatpush.xpose.msra.mxu0 %v1557
        %1574 = vmatpush.xpose.msra.mxu0 %v1554
        %1575 = vmatmul.f32.gmra.mxu0 %v1551
        %v1576 = vpop.f32.mrf.mxu0
        %v1577 = vadd.f32 0.0, %v1576
        %1578 = vdwg.mxu0
        %v1580 = vsel %vm734, %v884, 0
        %v1583 = vsel %vm734, %v716, 0
        %v1586 = vsel %vm734, %v717, 0
        %1588 = vmatpush.xpose.msra.mxu0 0.0
        %1589 = vmatpush.xpose.msra.mxu0 0.0
        %1590 = vmatpush.xpose.msra.mxu0 0.0
        %1591 = vmatpush.xpose.msra.mxu0 0.0
        %1592 = vmatpush.xpose.msra.mxu0 0.0
        %1593 = vmatpush.xpose.msra.mxu0 0.0
        %1594 = vmatpush.xpose.msra.mxu0 0.0
        %1595 = vmatpush.xpose.msra.mxu0 0.0
        %1596 = vmatpush.xpose.msra.mxu0 0.0
        %1597 = vmatpush.xpose.msra.mxu0 0.0
        %1598 = vmatpush.xpose.msra.mxu0 0.0
        %1599 = vmatpush.xpose.msra.mxu0 0.0
        %1600 = vmatpush.xpose.msra.mxu0 0.0
        %1601 = vmatpush.xpose.msra.mxu0 0.0
        %1602 = vmatpush.xpose.msra.mxu0 %v1586
        %1603 = vmatpush.xpose.msra.mxu0 %v1583
        %1604 = vmatmul.f32.gmra.mxu0 %v1580
        %v1605 = vpop.f32.mrf.mxu0
        %v1606 = vadd.f32 0.0, %v1605
        %1607 = vdwg.mxu0
        %v1609 = vsel %vm734, %v876, 0
        %v1612 = vsel %vm734, %v718, 0
        %v1615 = vsel %vm734, %v719, 0
        %1617 = vmatpush.xpose.msra.mxu0 0.0
        %1618 = vmatpush.xpose.msra.mxu0 0.0
        %1619 = vmatpush.xpose.msra.mxu0 0.0
        %1620 = vmatpush.xpose.msra.mxu0 0.0
        %1621 = vmatpush.xpose.msra.mxu0 0.0
        %1622 = vmatpush.xpose.msra.mxu0 0.0
        %1623 = vmatpush.xpose.msra.mxu0 0.0
        %1624 = vmatpush.xpose.msra.mxu0 0.0
        %1625 = vmatpush.xpose.msra.mxu0 0.0
        %1626 = vmatpush.xpose.msra.mxu0 0.0
        %1627 = vmatpush.xpose.msra.mxu0 0.0
        %1628 = vmatpush.xpose.msra.mxu0 0.0
        %1629 = vmatpush.xpose.msra.mxu0 0.0
        %1630 = vmatpush.xpose.msra.mxu0 0.0
        %1631 = vmatpush.xpose.msra.mxu0 %v1615
        %1632 = vmatpush.xpose.msra.mxu0 %v1612
        %1633 = vmatmul.f32.gmra.mxu0 %v1609
        %v1634 = vpop.f32.mrf.mxu0
        %v1635 = vadd.f32 0.0, %v1634
        %1636 = vdwg.mxu0
        %v1638 = vsel %vm734, %v886, 0
        %v1641 = vsel %vm734, %v720, 0
        %v1644 = vsel %vm734, %v721, 0
        %1646 = vmatpush.xpose.msra.mxu0 0.0
        %1647 = vmatpush.xpose.msra.mxu0 0.0
        %1648 = vmatpush.xpose.msra.mxu0 0.0
        %1649 = vmatpush.xpose.msra.mxu0 0.0
        %1650 = vmatpush.xpose.msra.mxu0 0.0
        %1651 = vmatpush.xpose.msra.mxu0 0.0
        %1652 = vmatpush.xpose.msra.mxu0 0.0
        %1653 = vmatpush.xpose.msra.mxu0 0.0
        %1654 = vmatpush.xpose.msra.mxu0 0.0
        %1655 = vmatpush.xpose.msra.mxu0 0.0
        %1656 = vmatpush.xpose.msra.mxu0 0.0
        %1657 = vmatpush.xpose.msra.mxu0 0.0
        %1658 = vmatpush.xpose.msra.mxu0 0.0
        %1659 = vmatpush.xpose.msra.mxu0 0.0
        %1660 = vmatpush.xpose.msra.mxu0 %v1644
        %1661 = vmatpush.xpose.msra.mxu0 %v1641
        %1662 = vmatmul.f32.gmra.mxu0 %v1638
        %v1663 = vpop.f32.mrf.mxu0
        %v1664 = vadd.f32 0.0, %v1663
        %1665 = vdwg.mxu0
        %v1667 = vsel %vm734, %v880, 0
        %v1670 = vsel %vm734, %v722, 0
        %v1673 = vsel %vm734, %v723, 0
        %1675 = vmatpush.xpose.msra.mxu0 0.0
        %1676 = vmatpush.xpose.msra.mxu0 0.0
        %1677 = vmatpush.xpose.msra.mxu0 0.0
        %1678 = vmatpush.xpose.msra.mxu0 0.0
        %1679 = vmatpush.xpose.msra.mxu0 0.0
        %1680 = vmatpush.xpose.msra.mxu0 0.0
        %1681 = vmatpush.xpose.msra.mxu0 0.0
        %1682 = vmatpush.xpose.msra.mxu0 0.0
        %1683 = vmatpush.xpose.msra.mxu0 0.0
        %1684 = vmatpush.xpose.msra.mxu0 0.0
        %1685 = vmatpush.xpose.msra.mxu0 0.0
        %1686 = vmatpush.xpose.msra.mxu0 0.0
        %1687 = vmatpush.xpose.msra.mxu0 0.0
        %1688 = vmatpush.xpose.msra.mxu0 0.0
        %1689 = vmatpush.xpose.msra.mxu0 %v1673
        %1690 = vmatpush.xpose.msra.mxu0 %v1670
        %1691 = vmatmul.f32.gmra.mxu0 %v1667
        %v1692 = vpop.f32.mrf.mxu0
        %v1693 = vadd.f32 0.0, %v1692
        %1694 = vdwg.mxu0
        %v1696 = vsel %vm734, %v888, 0
        %v1699 = vsel %vm734, %v724, 0
        %v1702 = vsel %vm734, %v725, 0
        %1704 = vmatpush.xpose.msra.mxu0 0.0
        %1705 = vmatpush.xpose.msra.mxu0 0.0
        %1706 = vmatpush.xpose.msra.mxu0 0.0
        %1707 = vmatpush.xpose.msra.mxu0 0.0
        %1708 = vmatpush.xpose.msra.mxu0 0.0
        %1709 = vmatpush.xpose.msra.mxu0 0.0
        %1710 = vmatpush.xpose.msra.mxu0 0.0
        %1711 = vmatpush.xpose.msra.mxu0 0.0
        %1712 = vmatpush.xpose.msra.mxu0 0.0
        %1713 = vmatpush.xpose.msra.mxu0 0.0
        %1714 = vmatpush.xpose.msra.mxu0 0.0
        %1715 = vmatpush.xpose.msra.mxu0 0.0
        %1716 = vmatpush.xpose.msra.mxu0 0.0
        %1717 = vmatpush.xpose.msra.mxu0 0.0
        %1718 = vmatpush.xpose.msra.mxu0 %v1702
        %1719 = vmatpush.xpose.msra.mxu0 %v1699
        %1720 = vmatmul.f32.gmra.mxu0 %v1696
        %v1721 = vpop.f32.mrf.mxu0
        %v1722 = vadd.f32 0.0, %v1721
        %1723 = vdwg.mxu0
        %v1724 = vrot.slane %v1577, 4
        %v1725 = vsel %vm833, %v1724, %v1519
        %v1727 = vunpack.c.l.s4 1983009808
        %v1728 = vunpack.c.0.s8 %v1727
        %v1729 = vperm.slane %v1725, %v1728
        %v1730 = vrot.slane %v1606, 4
        %v1731 = vsel %vm833, %v1730, %v1548
        %v1733 = vunpack.c.l.s4 1983009808
        %v1734 = vunpack.c.0.s8 %v1733
        %v1735 = vperm.slane %v1731, %v1734
        %v1736 = vrot.slane %v1693, 4
        %v1737 = vsel %vm833, %v1736, %v1635
        %v1739 = vunpack.c.l.s4 1983009808
        %v1740 = vunpack.c.0.s8 %v1739
        %v1741 = vperm.slane %v1737, %v1740
        %v1742 = vrot.slane %v1722, 4
        %v1743 = vsel %vm833, %v1742, %v1664
        %v1745 = vunpack.c.l.s4 1983009808
        %v1746 = vunpack.c.0.s8 %v1745
        %v1747 = vperm.slane %v1743, %v1746
        %v1748 = vrot.slane %v1735, 4
        %v1749 = vsel %vm833, %v1748, %v1729
        %v1750 = vrot.slane %v1729, 4
        %v1751 = vsel %vm833, %v1735, %v1750
        %v1753 = vunpack.c.l.s4 1934713408
        %v1754 = vunpack.c.0.s8 %v1753
        %v1755 = vperm.slane %v1749, %v1754
        %v1757 = vunpack.c.l.s4 1934713408
        %v1758 = vunpack.c.0.s8 %v1757
        %v1759 = vperm.slane %v1751, %v1758
        %v1760 = vrot.slane %v1747, 4
        %v1761 = vsel %vm833, %v1760, %v1741
        %v1762 = vrot.slane %v1741, 4
        %v1763 = vsel %vm833, %v1747, %v1762
        %v1765 = vunpack.c.l.s4 1934713408
        %v1766 = vunpack.c.0.s8 %v1765
        %v1767 = vperm.slane %v1761, %v1766
        %v1769 = vunpack.c.l.s4 1934713408
        %v1770 = vunpack.c.0.s8 %v1769
        %v1771 = vperm.slane %v1763, %v1770
        %v1772 = vrot.slane %v1767, 4
        %v1773 = vsel %vm833, %v1772, %v1755
        %v1774 = vrot.slane %v1755, 4
        %v1775 = vsel %vm833, %v1767, %v1774
        %v1776 = vrot.slane %v1771, 4
        %v1777 = vsel %vm833, %v1776, %v1759
        %v1778 = vrot.slane %v1759, 4
        %v1779 = vsel %vm833, %v1771, %v1778
        %vm1780 = vcmask 64512
        %v1782 = vsel %vm1780, %v1001, 0
        %v1785 = vsel %vm1780, %v1187, 0
        %v1788 = vsel %vm1780, %v1241, 0
        %1790 = vmatpush.xpose.msra.mxu0 0.0
        %1791 = vmatpush.xpose.msra.mxu0 0.0
        %1792 = vmatpush.xpose.msra.mxu0 0.0
        %1793 = vmatpush.xpose.msra.mxu0 0.0
        %1794 = vmatpush.xpose.msra.mxu0 0.0
        %1795 = vmatpush.xpose.msra.mxu0 0.0
        %1796 = vmatpush.xpose.msra.mxu0 0.0
        %1797 = vmatpush.xpose.msra.mxu0 0.0
        %1798 = vmatpush.xpose.msra.mxu0 0.0
        %1799 = vmatpush.xpose.msra.mxu0 0.0
        %1800 = vmatpush.xpose.msra.mxu0 0.0
        %1801 = vmatpush.xpose.msra.mxu0 0.0
        %1802 = vmatpush.xpose.msra.mxu0 0.0
        %1803 = vmatpush.xpose.msra.mxu0 0.0
        %1804 = vmatpush.xpose.msra.mxu0 %v1788
        %1805 = vmatpush.xpose.msra.mxu0 %v1785
        %1806 = vmatmul.f32.gmra.mxu0 %v1782
        %v1807 = vpop.f32.mrf.mxu0
        %v1808 = vadd.f32 %v1773, %v1807
        %1809 = vdwg.mxu0
        %v1811 = vsel %vm1780, %v1003, 0
        %v1814 = vsel %vm1780, %v1189, 0
        %v1817 = vsel %vm1780, %v1243, 0
        %1819 = vmatpush.xpose.msra.mxu0 0.0
        %1820 = vmatpush.xpose.msra.mxu0 0.0
        %1821 = vmatpush.xpose.msra.mxu0 0.0
        %1822 = vmatpush.xpose.msra.mxu0 0.0
        %1823 = vmatpush.xpose.msra.mxu0 0.0
        %1824 = vmatpush.xpose.msra.mxu0 0.0
        %1825 = vmatpush.xpose.msra.mxu0 0.0
        %1826 = vmatpush.xpose.msra.mxu0 0.0
        %1827 = vmatpush.xpose.msra.mxu0 0.0
        %1828 = vmatpush.xpose.msra.mxu0 0.0
        %1829 = vmatpush.xpose.msra.mxu0 0.0
        %1830 = vmatpush.xpose.msra.mxu0 0.0
        %1831 = vmatpush.xpose.msra.mxu0 0.0
        %1832 = vmatpush.xpose.msra.mxu0 0.0
        %1833 = vmatpush.xpose.msra.mxu0 %v1817
        %1834 = vmatpush.xpose.msra.mxu0 %v1814
        %1835 = vmatmul.f32.gmra.mxu0 %v1811
        %v1836 = vpop.f32.mrf.mxu0
        %v1837 = vadd.f32 %v1775, %v1836
        %1838 = vdwg.mxu0
        %v1840 = vsel %vm1780, %v1005, 0
        %v1843 = vsel %vm1780, %v1191, 0
        %v1846 = vsel %vm1780, %v1245, 0
        %1848 = vmatpush.xpose.msra.mxu0 0.0
        %1849 = vmatpush.xpose.msra.mxu0 0.0
        %1850 = vmatpush.xpose.msra.mxu0 0.0
        %1851 = vmatpush.xpose.msra.mxu0 0.0
        %1852 = vmatpush.xpose.msra.mxu0 0.0
        %1853 = vmatpush.xpose.msra.mxu0 0.0
        %1854 = vmatpush.xpose.msra.mxu0 0.0
        %1855 = vmatpush.xpose.msra.mxu0 0.0
        %1856 = vmatpush.xpose.msra.mxu0 0.0
        %1857 = vmatpush.xpose.msra.mxu0 0.0
        %1858 = vmatpush.xpose.msra.mxu0 0.0
        %1859 = vmatpush.xpose.msra.mxu0 0.0
        %1860 = vmatpush.xpose.msra.mxu0 0.0
        %1861 = vmatpush.xpose.msra.mxu0 0.0
        %1862 = vmatpush.xpose.msra.mxu0 %v1846
        %1863 = vmatpush.xpose.msra.mxu0 %v1843
        %1864 = vmatmul.f32.gmra.mxu0 %v1840
        %v1865 = vpop.f32.mrf.mxu0
        %v1866 = vadd.f32 %v1777, %v1865
        %1867 = vdwg.mxu0
        %v1869 = vsel %vm1780, %v1007, 0
        %v1872 = vsel %vm1780, %v1193, 0
        %v1875 = vsel %vm1780, %v1247, 0
        %1877 = vmatpush.xpose.msra.mxu0 0.0
        %1878 = vmatpush.xpose.msra.mxu0 0.0
        %1879 = vmatpush.xpose.msra.mxu0 0.0
        %1880 = vmatpush.xpose.msra.mxu0 0.0
        %1881 = vmatpush.xpose.msra.mxu0 0.0
        %1882 = vmatpush.xpose.msra.mxu0 0.0
        %1883 = vmatpush.xpose.msra.mxu0 0.0
        %1884 = vmatpush.xpose.msra.mxu0 0.0
        %1885 = vmatpush.xpose.msra.mxu0 0.0
        %1886 = vmatpush.xpose.msra.mxu0 0.0
        %1887 = vmatpush.xpose.msra.mxu0 0.0
        %1888 = vmatpush.xpose.msra.mxu0 0.0
        %1889 = vmatpush.xpose.msra.mxu0 0.0
        %1890 = vmatpush.xpose.msra.mxu0 0.0
        %1891 = vmatpush.xpose.msra.mxu0 %v1875
        %1892 = vmatpush.xpose.msra.mxu0 %v1872
        %1893 = vmatmul.f32.gmra.mxu0 %v1869
        %v1894 = vpop.f32.mrf.mxu0
        %v1895 = vadd.f32 %v1779, %v1894
        %1896 = vdwg.mxu0
        %v1897 = vmul.f32 %v1808, 0.35355338
        %v1898 = vmul.f32 %v1837, 0.35355338
        %v1899 = vmul.f32 %v1866, 0.35355338
        %v1900 = vmul.f32 %v1895, 0.35355338
        %vm1901 = vcmask 130048
        %v1902 = vsel %vm1901, %v1897, -inf
        %1903 = vmax.xlane.f32.xlu0 %v1902
        %v1904 = vpop.xlane.xlu0 %1903
        %v1905 = vsel %vm1901, %v1898, -inf
        %1906 = vmax.xlane.f32.xlu0 %v1905
        %v1907 = vpop.xlane.xlu0 %1906
        %v1908 = vsel %vm1901, %v1899, -inf
        %1909 = vmax.xlane.f32.xlu0 %v1908
        %v1910 = vpop.xlane.xlu0 %1909
        %v1911 = vsel %vm1901, %v1900, -inf
        %1912 = vmax.xlane.f32.xlu0 %v1911
        %v1913 = vpop.xlane.xlu0 %1912
        %v1914 = vsub.f32 %v1897, %v1904
        %v1915 = vsub.f32 %v1898, %v1907
        %v1916 = vsub.f32 %v1899, %v1910
        %v1917 = vsub.f32 %v1900, %v1913
        %v1918 = vmul.f32 %v1914, 1.442695
        %v1919 = vpow.pop %v1918
        %v1920 = vmul.f32 %v1915, 1.442695
        %v1921 = vpow.pop %v1920
        %v1922 = vmul.f32 %v1916, 1.442695
        %v1923 = vpow.pop %v1922
        %v1924 = vmul.f32 %v1917, 1.442695
        %v1925 = vpow.pop %v1924
        %v1926 = vsel %vm1901, %v1919, 0.0
        %1927 = vadd.xlane.f32.xlu0 %v1926
        %v1928 = vpop.xlane.xlu0 %1927
        %v1929 = vsel %vm1901, %v1921, 0.0
        %1930 = vadd.xlane.f32.xlu0 %v1929
        %v1931 = vpop.xlane.xlu0 %1930
        %v1932 = vsel %vm1901, %v1923, 0.0
        %1933 = vadd.xlane.f32.xlu0 %v1932
        %v1934 = vpop.xlane.xlu0 %1933
        %v1935 = vsel %vm1901, %v1925, 0.0
        %1936 = vadd.xlane.f32.xlu0 %v1935
        %v1937 = vpop.xlane.xlu0 %1936
        %v1938 = vrcp.pop %v1928
        %v1939 = vrcp.pop %v1931
        %v1940 = vrcp.pop %v1934
        %v1941 = vrcp.pop %v1937
        %v1942 = vmul.f32 %v1919, %v1938
        %v1943 = vmul.f32 %v1921, %v1939
        %v1944 = vmul.f32 %v1923, %v1940
        %v1945 = vmul.f32 %v1925, %v1941
        %1946 = vst.msk [vmem:[%s692] sm:$0xff] %vm1901, %v1942
        %1947 = vst.msk [vmem:[%s692 + $0x8] sm:$0xff] %vm1901, %v1943
        %1948 = vst.msk [vmem:[%s692 + $0x10] sm:$0xff] %vm1901, %v1944
        %1949 = vst.msk [vmem:[%s692 + $0x18] sm:$0xff] %vm1901, %v1945
        %v1951 = vsel %vm1901, %v1942, 0
        %1953 = vmatpush.msra.mxu0 0.0
        %1954 = vmatpush.msra.mxu0 0.0
        %1955 = vmatpush.msra.mxu0 0.0
        %1956 = vmatpush.msra.mxu0 0.0
        %1957 = vmatpush.msra.mxu0 0.0
        %1958 = vmatpush.msra.mxu0 0.0
        %1959 = vmatpush.msra.mxu0 0.0
        %1960 = vmatpush.msra.mxu0 0.0
        %1961 = vmatpush.msra.mxu0 0.0
        %1962 = vmatpush.msra.mxu0 0.0
        %1963 = vmatpush.msra.mxu0 0.0
        %1964 = vmatpush.msra.mxu0 0.0
        %1965 = vmatpush.msra.mxu0 0.0
        %1966 = vmatpush.msra.mxu0 0.0
        %1967 = vmatpush.msra.mxu0 %v1485
        %1968 = vmatpush.msra.mxu0 %v1431
        %1969 = vmatmul.f32.gmra.mxu0 %v1951
        %v1970 = vpop.f32.mrf.mxu0
        %v1971 = vadd.f32 0.0, %v1970
        %1972 = vdwg.mxu0
        %v1974 = vsel %vm1901, %v1943, 0
        %1976 = vmatpush.msra.mxu0 0.0
        %1977 = vmatpush.msra.mxu0 0.0
        %1978 = vmatpush.msra.mxu0 0.0
        %1979 = vmatpush.msra.mxu0 0.0
        %1980 = vmatpush.msra.mxu0 0.0
        %1981 = vmatpush.msra.mxu0 0.0
        %1982 = vmatpush.msra.mxu0 0.0
        %1983 = vmatpush.msra.mxu0 0.0
        %1984 = vmatpush.msra.mxu0 0.0
        %1985 = vmatpush.msra.mxu0 0.0
        %1986 = vmatpush.msra.mxu0 0.0
        %1987 = vmatpush.msra.mxu0 0.0
        %1988 = vmatpush.msra.mxu0 0.0
        %1989 = vmatpush.msra.mxu0 0.0
        %1990 = vmatpush.msra.mxu0 %v1487
        %1991 = vmatpush.msra.mxu0 %v1433
        %1992 = vmatmul.f32.gmra.mxu0 %v1974
        %v1993 = vpop.f32.mrf.mxu0
        %v1994 = vadd.f32 0.0, %v1993
        %1995 = vdwg.mxu0
        %v1997 = vsel %vm1901, %v1944, 0
        %1999 = vmatpush.msra.mxu0 0.0
        %2000 = vmatpush.msra.mxu0 0.0
        %2001 = vmatpush.msra.mxu0 0.0
        %2002 = vmatpush.msra.mxu0 0.0
        %2003 = vmatpush.msra.mxu0 0.0
        %2004 = vmatpush.msra.mxu0 0.0
        %2005 = vmatpush.msra.mxu0 0.0
        %2006 = vmatpush.msra.mxu0 0.0
        %2007 = vmatpush.msra.mxu0 0.0
        %2008 = vmatpush.msra.mxu0 0.0
        %2009 = vmatpush.msra.mxu0 0.0
        %2010 = vmatpush.msra.mxu0 0.0
        %2011 = vmatpush.msra.mxu0 0.0
        %2012 = vmatpush.msra.mxu0 0.0
        %2013 = vmatpush.msra.mxu0 %v1489
        %2014 = vmatpush.msra.mxu0 %v1435
        %2015 = vmatmul.f32.gmra.mxu0 %v1997
        %v2016 = vpop.f32.mrf.mxu0
        %v2017 = vadd.f32 0.0, %v2016
        %2018 = vdwg.mxu0
        %v2020 = vsel %vm1901, %v1945, 0
        %2022 = vmatpush.msra.mxu0 0.0
        %2023 = vmatpush.msra.mxu0 0.0
        %2024 = vmatpush.msra.mxu0 0.0
        %2025 = vmatpush.msra.mxu0 0.0
        %2026 = vmatpush.msra.mxu0 0.0
        %2027 = vmatpush.msra.mxu0 0.0
        %2028 = vmatpush.msra.mxu0 0.0
        %2029 = vmatpush.msra.mxu0 0.0
        %2030 = vmatpush.msra.mxu0 0.0
        %2031 = vmatpush.msra.mxu0 0.0
        %2032 = vmatpush.msra.mxu0 0.0
        %2033 = vmatpush.msra.mxu0 0.0
        %2034 = vmatpush.msra.mxu0 0.0
        %2035 = vmatpush.msra.mxu0 0.0
        %2036 = vmatpush.msra.mxu0 %v1491
        %2037 = vmatpush.msra.mxu0 %v1437
        %2038 = vmatmul.f32.gmra.mxu0 %v2020
        %v2039 = vpop.f32.mrf.mxu0
        %v2040 = vadd.f32 0.0, %v2039
        %2041 = vdwg.mxu0
        %v2042 = vrot.slane %v2017, 4
        %v2043 = vsel %vm833, %v2042, %v1971
        %v2044 = vrot.slane %v1971, 4
        %v2045 = vsel %vm833, %v2017, %v2044
        %v2047 = vunpack.c.l.s4 1983009808
        %v2048 = vunpack.c.0.s8 %v2047
        %v2049 = vperm.slane %v2043, %v2048
        %v2051 = vunpack.c.l.s4 1983009808
        %v2052 = vunpack.c.0.s8 %v2051
        %v2053 = vperm.slane %v2045, %v2052
        %v2054 = vrot.slane %v2040, 4
        %v2055 = vsel %vm833, %v2054, %v1994
        %v2056 = vrot.slane %v1994, 4
        %v2057 = vsel %vm833, %v2040, %v2056
        %v2059 = vunpack.c.l.s4 1983009808
        %v2060 = vunpack.c.0.s8 %v2059
        %v2061 = vperm.slane %v2055, %v2060
        %v2063 = vunpack.c.l.s4 1983009808
        %v2064 = vunpack.c.0.s8 %v2063
        %v2065 = vperm.slane %v2057, %v2064
        %v2066 = vrot.slane %v2061, 4
        %v2067 = vsel %vm833, %v2066, %v2049
        %v2068 = vrot.slane %v2049, 4
        %v2069 = vsel %vm833, %v2061, %v2068
        %v2071 = vunpack.c.l.s4 1934713408
        %v2072 = vunpack.c.0.s8 %v2071
        %v2073 = vperm.slane %v2067, %v2072
        %v2075 = vunpack.c.l.s4 1934713408
        %v2076 = vunpack.c.0.s8 %v2075
        %v2077 = vperm.slane %v2069, %v2076
        %v2078 = vrot.slane %v2065, 4
        %v2079 = vsel %vm833, %v2078, %v2053
        %v2080 = vrot.slane %v2053, 4
        %v2081 = vsel %vm833, %v2065, %v2080
        %v2083 = vunpack.c.l.s4 1934713408
        %v2084 = vunpack.c.0.s8 %v2083
        %v2085 = vperm.slane %v2079, %v2084
        %v2087 = vunpack.c.l.s4 1934713408
        %v2088 = vunpack.c.0.s8 %v2087
        %v2089 = vperm.slane %v2081, %v2088
        %v2090 = vrot.slane %v2073, 4
        %v2091 = vsel %vm833, 0.0, %v2090
        %v2092 = vrot.slane %v2077, 4
        %v2093 = vsel %vm833, 0.0, %v2092
        %v2094 = vrot.slane %v2085, 4
        %v2095 = vsel %vm833, 0.0, %v2094
        %v2096 = vrot.slane %v2089, 4
        %v2097 = vsel %vm833, 0.0, %v2096
        %v2098 = vsel %vm833, %v2092, %v2073
        %v2100 = vunpack.c.l.s4 1983009808
        %v2101 = vunpack.c.0.s8 %v2100
        %v2102 = vperm.slane %v2098, %v2101
        %v2103 = vrot.slane %v2093, 4
        %v2104 = vsel %vm833, %v2103, %v2091
        %v2106 = vunpack.c.l.s4 1983009808
        %v2107 = vunpack.c.0.s8 %v2106
        %v2108 = vperm.slane %v2104, %v2107
        %v2109 = vsel %vm833, %v2096, %v2085
        %v2111 = vunpack.c.l.s4 1983009808
        %v2112 = vunpack.c.0.s8 %v2111
        %v2113 = vperm.slane %v2109, %v2112
        %v2114 = vrot.slane %v2097, 4
        %v2115 = vsel %vm833, %v2114, %v2095
        %v2117 = vunpack.c.l.s4 1983009808
        %v2118 = vunpack.c.0.s8 %v2117
        %v2119 = vperm.slane %v2115, %v2118
        %v2120 = vrot.slane %v2108, 4
        %v2121 = vsel %vm833, %v2120, %v2102
        %v2122 = vrot.slane %v2102, 4
        %v2123 = vsel %vm833, %v2108, %v2122
        %v2125 = vunpack.c.l.s4 1934713408
        %v2126 = vunpack.c.0.s8 %v2125
        %v2127 = vperm.slane %v2121, %v2126
        %v2129 = vunpack.c.l.s4 1934713408
        %v2130 = vunpack.c.0.s8 %v2129
        %v2131 = vperm.slane %v2123, %v2130
        %v2132 = vrot.slane %v2119, 4
        %v2133 = vsel %vm833, %v2132, %v2113
        %v2134 = vrot.slane %v2113, 4
        %v2135 = vsel %vm833, %v2119, %v2134
        %v2137 = vunpack.c.l.s4 1934713408
        %v2138 = vunpack.c.0.s8 %v2137
        %v2139 = vperm.slane %v2133, %v2138
        %v2141 = vunpack.c.l.s4 1934713408
        %v2142 = vunpack.c.0.s8 %v2141
        %v2143 = vperm.slane %v2135, %v2142
        %v2144 = vrot.slane %v2139, 4
        %v2145 = vsel %vm833, %v2144, %v2127
        %v2146 = vrot.slane %v2127, 4
        %v2147 = vsel %vm833, %v2139, %v2146
        %v2148 = vrot.slane %v2143, 4
        %v2149 = vsel %vm833, %v2148, %v2131
        %v2150 = vrot.slane %v2131, 4
        %v2151 = vsel %vm833, %v2143, %v2150
        %2153 = vrot.lane.b32.xlu0 %v2147, 8
        %v2154 = vpop.permute.xlu0 %2153
        %2157 = vrot.lane.b32.xlu0 %v2149, 16
        %v2158 = vpop.permute.xlu0 %2157
        %2161 = vrot.lane.b32.xlu0 %v2151, 24
        %v2162 = vpop.permute.xlu0 %2161
        %v2164 = vsel %vm1780, %v2145, %v2154
        %v2165 = vsel %vm1901, %v2164, %v2158
        %vm2166 = vcmask 195584
        %v2167 = vsel %vm2166, %v2165, %v2162
        %v2168 = vld [vmem:[%s8] sm:$0xff]
        %v2169 = vld [vmem:[%s8 + $0x8] sm:$0xff]
        %v2170 = vld [vmem:[%s8 + $0x10] sm:$0xff]
        %v2171 = vld [vmem:[%s8 + $0x18] sm:$0xff]
        %v2172 = vld [vmem:[%s9] sm:$0x1]
        %v2174 = vperm.slane %v2172, 0
        %v2177 = vsel %vm734, %v2167, 0
        %2179 = vmatpush.msra.mxu0 0.0
        %2180 = vmatpush.msra.mxu0 0.0
        %2181 = vmatpush.msra.mxu0 0.0
        %2182 = vmatpush.msra.mxu0 0.0
        %2183 = vmatpush.msra.mxu0 0.0
        %2184 = vmatpush.msra.mxu0 0.0
        %2185 = vmatpush.msra.mxu0 0.0
        %2186 = vmatpush.msra.mxu0 0.0
        %2187 = vmatpush.msra.mxu0 0.0
        %2188 = vmatpush.msra.mxu0 0.0
        %2189 = vmatpush.msra.mxu0 0.0
        %2190 = vmatpush.msra.mxu0 0.0
        %2191 = vmatpush.msra.mxu0 %v2171
        %2192 = vmatpush.msra.mxu0 %v2170
        %2193 = vmatpush.msra.mxu0 %v2169
        %2194 = vmatpush.msra.mxu0 %v2168
        %2195 = vmatmul.f32.gmra.mxu0 %v2177
        %v2196 = vpop.f32.mrf.mxu0
        %v2197 = vadd.f32 %v2174, %v2196
        %2198 = vdwg.mxu0
        %v2199 = vadd.f32 %v2197, %v707
        %v2200 = vld [vmem:[%s10] sm:$0x1]
        %v2201 = vld [vmem:[%s11] sm:$0x1]
        %v2202 = vsel %vm734, %v2199, 0.0
        %2203 = vadd.xlane.f32.xlu0 %v2202
        %v2204 = vpop.xlane.xlu0 %2203
        %v2205 = vrcp.pop 32.0
        %v2206 = vmul.f32 32.0, %v2205
        %v2207 = vsub.f32 1.0, %v2206
        %v2208 = vmul.f32 %v2205, %v2207
        %v2209 = vadd.f32 %v2205, %v2208
        %vm2210 = vweird.f32 %v2205
        %v2211 = vsel %vm2210, %v2205, %v2209
        %v2212 = vmul.f32 %v2204, %v2211
        %v2213 = vsub.f32 %v2199, %v2212
        %v2214 = vmul.f32 %v2213, %v2213
        %v2215 = vsel %vm734, %v2214, 0.0
        %2216 = vadd.xlane.f32.xlu0 %v2215
        %v2217 = vpop.xlane.xlu0 %2216
        %v2218 = vmul.f32 %v2217, %v2211
        %v2219 = vadd.f32 %v2218, 1e-05
        %v2220 = vrsqrt.pop %v2219
        %v2221 = vmul.f32 %v2220, %v2219
        %v2222 = vmul.f32 %v2221, %v2220
        %v2223 = vmul.f32 0.5, %v2222
        %v2224 = vsub.f32 1.5, %v2223
        %v2225 = vmul.f32 %v2220, %v2224
        %vm2226 = vweird.f32 %v2219
        %vm2227 = vweird.f32 %v2220
        %vm2228 = vmor %vm2226, %vm2227
        %v2229 = vsel %vm2228, %v2220, %v2225
        %v2230 = vmul.f32 %v2213, %v2229
        %v2232 = vperm.slane %v2200, 0
        %v2234 = vmul.f32 %v2230, %v2232
        %v2236 = vperm.slane %v2201, 0
        %v2238 = vadd.f32 %v2234, %v2236
        %v2239 = vld [vmem:[%s12] sm:$0xff]
        %v2240 = vld [vmem:[%s12 + $0x8] sm:$0xff]
        %v2241 = vld [vmem:[%s12 + $0x10] sm:$0xff]
        %v2242 = vld [vmem:[%s12 + $0x18] sm:$0xff]
        %v2243 = vld [vmem:[%s13] sm:$0x1]
        %v2245 = vperm.slane %v2243, 0
        %v2248 = vsel %vm734, %v2238, 0
        %2250 = vmatpush.msra.mxu0 0.0
        %2251 = vmatpush.msra.mxu0 0.0
        %2252 = vmatpush.msra.mxu0 0.0
        %2253 = vmatpush.msra.mxu0 0.0
        %2254 = vmatpush.msra.mxu0 0.0
        %2255 = vmatpush.msra.mxu0 0.0
        %2256 = vmatpush.msra.mxu0 0.0
        %2257 = vmatpush.msra.mxu0 0.0
        %2258 = vmatpush.msra.mxu0 0.0
        %2259 = vmatpush.msra.mxu0 0.0
        %2260 = vmatpush.msra.mxu0 0.0
        %2261 = vmatpush.msra.mxu0 0.0
        %2262 = vmatpush.msra.mxu0 %v2242
        %2263 = vmatpush.msra.mxu0 %v2241
        %2264 = vmatpush.msra.mxu0 %v2240
        %2265 = vmatpush.msra.mxu0 %v2239
        %2266 = vmatmul.f32.gmra.mxu0 %v2248
        %v2267 = vpop.f32.mrf.mxu0
        %v2268 = vadd.f32 %v2245, %v2267
        %2269 = vdwg.mxu0
        %v2270 = vmax.f32 %v2268, 0.0
        %v2271 = vld [vmem:[%s14] sm:$0xff]
        %v2272 = vld [vmem:[%s14 + $0x8] sm:$0xff]
        %v2273 = vld [vmem:[%s14 + $0x10] sm:$0xff]
        %v2274 = vld [vmem:[%s14 + $0x18] sm:$0xff]
        %v2275 = vld [vmem:[%s14 + $0x20] sm:$0xff]
        %v2276 = vld [vmem:[%s14 + $0x28] sm:$0xff]
        %v2277 = vld [vmem:[%s14 + $0x30] sm:$0xff]
        %v2278 = vld [vmem:[%s14 + $0x38] sm:$0xff]
        %v2279 = vld [vmem:[%s15] sm:$0x1]
        %v2281 = vperm.slane %v2279, 0
        %vm2283 = vcmask 523264
        %v2285 = vsel %vm2283, %v2270, 0
        %2287 = vmatpush.msra.mxu0 0.0
        %2288 = vmatpush.msra.mxu0 0.0
        %2289 = vmatpush.msra.mxu0 0.0
        %2290 = vmatpush.msra.mxu0 0.0
        %2291 = vmatpush.msra.mxu0 0.0
        %2292 = vmatpush.msra.mxu0 0.0
        %2293 = vmatpush.msra.mxu0 0.0
        %2294 = vmatpush.msra.mxu0 0.0
        %2295 = vmatpush.msra.mxu0 %v2278
        %2296 = vmatpush.msra.mxu0 %v2277
        %2297 = vmatpush.msra.mxu0 %v2276
        %2298 = vmatpush.msra.mxu0 %v2275
        %2299 = vmatpush.msra.mxu0 %v2274
        %2300 = vmatpush.msra.mxu0 %v2273
        %2301 = vmatpush.msra.mxu0 %v2272
        %2302 = vmatpush.msra.mxu0 %v2271
        %2303 = vmatmul.f32.gmra.mxu0 %v2285
        %v2304 = vpop.f32.mrf.mxu0
        %v2305 = vadd.f32 %v2281, %v2304
        %2306 = vdwg.mxu0
        %v2307 = vadd.f32 %v2238, %v2305
        %v2308 = vld [vmem:[%s16] sm:$0x1]
        %v2309 = vld [vmem:[%s17] sm:$0x1]
        %v2310 = vsel %vm734, %v2307, 0.0
        %2311 = vadd.xlane.f32.xlu0 %v2310
        %v2312 = vpop.xlane.xlu0 %2311
        %v2313 = vmul.f32 %v2312, %v2211
        %v2314 = vsub.f32 %v2307, %v2313
        %v2315 = vmul.f32 %v2314, %v2314
        %v2316 = vsel %vm734, %v2315, 0.0
        %2317 = vadd.xlane.f32.xlu0 %v2316
        %v2318 = vpop.xlane.xlu0 %2317
        %v2319 = vmul.f32 %v2318, %v2211
        %v2320 = vadd.f32 %v2319, 1e-05
        %v2321 = vrsqrt.pop %v2320
        %v2322 = vmul.f32 %v2321, %v2320
        %v2323 = vmul.f32 %v2322, %v2321
        %v2324 = vmul.f32 0.5, %v2323
        %v2325 = vsub.f32 1.5, %v2324
        %v2326 = vmul.f32 %v2321, %v2325
        %vm2327 = vweird.f32 %v2320
        %vm2328 = vweird.f32 %v2321
        %vm2329 = vmor %vm2327, %vm2328
        %v2330 = vsel %vm2329, %v2321, %v2326
        %v2331 = vmul.f32 %v2314, %v2330
        %v2333 = vperm.slane %v2308, 0
        %v2335 = vmul.f32 %v2331, %v2333
        %v2337 = vperm.slane %v2309, 0
        %v2339 = vadd.f32 %v2335, %v2337
        %2340 = vst.msk [vmem:[%s685] sm:$0xff] %vm734, %v2339
        %s2341 = sand.u32 %s459, 1
        %s2342 = scalar_lea.sflag [#allocation4], %s2341
        %s2343 = sand.u32 %s459, 1
        %s2344 = smul.addr %s2343, 8
        %s2345 = scalar_lea.vmem [#allocation5], %s2344
        %s2346 = sand.u32 %s487, 1
        %s2347 = scalar_lea.sflag [#allocation7], %s2346
        %s2348 = sand.u32 %s487, 1
        %s2349 = smul.addr %s2348, 32
        %s2350 = scalar_lea.vmem [#allocation6], %s2349
        // Predicated region
        $region97: #{rpe_transformer_layer.1} parent=91 // pred_check
          %p2351 = pneg %p469
        $region98: #{rpe_transformer_layer.1} parent=91 // pred_check_branch
          %2353 = sbr.rel (%p2351) target = $region100
        $region99: #{rpe_transformer_layer.1} parent=91 // pred_region
          %2355 = vsyncadd %s2342, 0
          %s2356 = smul.addr %s44, 2
          %s2357 = sadd.s32 %s45, %s2356
          %s2358 = smul.addr %s2357, 8
          %s2359 = scalar_lea.hbm %s18, %s2358
          %s2361 = sshll.u32 %s2345, 4
          %s2362 = int_to_ptr.vmem [resolvable:$true] %s2361
          %s2363 = sshll.u32 %s2359, 4
          %s2364 = int_to_ptr.hbm [resolvable:$true] %s2363
          %2366 = dma.vmem_to_hbm [thread:$0]  %s2362, 128, %s2364, %s2342
        $region100: #{rpe_transformer_layer.1} parent=91 // pred_fallthru
          _
        // Predicated region
        $region101: #{rpe_transformer_layer.1} parent=91 // pred_check
          %p2367 = pneg %p497
        $region102: #{rpe_transformer_layer.1} parent=91 // pred_check_branch
          %2369 = sbr.rel (%p2367) target = $region104
        $region103: #{rpe_transformer_layer.1} parent=91 // pred_region
          %2371 = vsyncadd %s2347, 0
          %s2372 = smul.addr %s44, 8
          %s2373 = sadd.s32 %s45, %s2372
          %s2374 = smul.addr %s2373, 8
          %s2375 = scalar_lea.hbm %s19, %s2374
          %s2376 = sshll.u32 %s2350, 4
          %s2377 = int_to_ptr.vmem [resolvable:$true] %s2376
          %s2378 = sshll.u32 %s2375, 4
          %s2379 = int_to_ptr.hbm [resolvable:$true] %s2378
          %2384 = dma.vmem_to_hbm [thread:$0]  %s2377, 512, %s2379, %s2347, 128, 256, 8
        $region104: #{rpe_transformer_layer.1} parent=91 // pred_fallthru
          _
      $region92: #{rpe_transformer_layer.1} parent=5 // pred_fallthru
        _
      %p2385 = scmp.le.s32.totalorder 2, %s35
      // Predicated region
      $region105: #{rpe_transformer_layer.1} parent=5 // pred_check
        %p2386 = pneg %p2385
      $region106: #{rpe_transformer_layer.1} parent=5 // pred_check_branch
        %2388 = sbr.rel (%p2386) target = $region108
      $region107: #{rpe_transformer_layer.1} parent=5 // pred_region
        %s2389 = ssub.s32 %s35, 2
        // Predicated region
        $region109: #{rpe_transformer_layer.1} parent=107 // pred_check
          %p2390 = pneg %p475
        $region110: #{rpe_transformer_layer.1} parent=107 // pred_check_branch
          %2392 = sbr.rel (%p2390) target = $region112
        $region111: #{rpe_transformer_layer.1} parent=107 // pred_region
          %s2393 = sand.u32 %s460, 1
          %s2394 = scalar_lea.sflag [#allocation4], %s2393
          %s2395 = sand.u32 %s460, 1
          %s2396 = smul.addr %s2395, 8
          %s2397 = scalar_lea.vmem [#allocation5], %s2396
          %2399 = dma.done %s2394, 128
        $region112: #{rpe_transformer_layer.1} parent=107 // pred_fallthru
          _
        // Predicated region
        $region113: #{rpe_transformer_layer.1} parent=107 // pred_check
          %p2400 = pneg %p503
        $region114: #{rpe_transformer_layer.1} parent=107 // pred_check_branch
          %2402 = sbr.rel (%p2400) target = $region116
        $region115: #{rpe_transformer_layer.1} parent=107 // pred_region
          %s2403 = sand.u32 %s488, 1
          %s2404 = scalar_lea.sflag [#allocation7], %s2403
          %s2405 = sand.u32 %s488, 1
          %s2406 = smul.addr %s2405, 32
          %s2407 = scalar_lea.vmem [#allocation6], %s2406
          %2409 = dma.done %s2404, 512
        $region116: #{rpe_transformer_layer.1} parent=107 // pred_fallthru
          _
      $region108: #{rpe_transformer_layer.1} parent=5 // pred_fallthru
        _
    $region6: #{rpe_transformer_layer.1} parent=1 // loop_footer
      %s39 = sadd.s32 1, %s35
    $region7: #{rpe_transformer_layer.1} parent=1 // loop_footer_branch
      %34 = sbr.rel target = $region3
    $region8: #{rpe_transformer_layer.1} parent=1 // loop_exit
      _
    %2410 = vsyncpa [#allocation3], 1
    %s2411 = scalar_lea.sflag [#allocation3], 1
    %2412 = vsyncpa %s2411, 1
    %2413 = vsyncpa [#allocation4], 1
    %s2414 = scalar_lea.sflag [#allocation4], 1
    %2415 = vsyncpa %s2414, 1
    %2416 = vsyncpa [#allocation7], 1
    %s2417 = scalar_lea.sflag [#allocation7], 1
    %2418 = vsyncpa %s2417, 1

</llo_original>
